<compile_context>
chip_gen: v7x
topology: tpu7x:2x2x1
jax: 0.10.0
libtpu: 0.0.40
codegen_flags: <defaults>
</compile_context>

<pallas_src>
import math

import jax
import jax.numpy as jnp
import numpy as np
from jax.experimental import pallas as pl
from jax.experimental.pallas import tpu as pltpu

# ---------------- model hyper-params (small, consistent with the module) ---------
VOCAB = 50
B = 2            # batch
S = 8            # sequence length
H = 32           # num_hiddens (= key/query/value size = ffn_num_input)
NH = 4           # num_heads
DH = H // NH     # per-head dim
FFN = 64         # ffn_num_hiddens
NUM_LAYERS = 2
LN_EPS = 1e-5
NEG_INF = -1e6


# ---------------- Pallas kernel: full encoder stack, one sequence per grid step --
def encoder_stack_kernel(vlen_ref,          # SMEM (B,) int32   (scalar prefetch)
                         x_ref,             # (S, H)  f32
                         wqkv_ref,          # (L, H, 3H) bf16   (Wq pre-scaled)
                         wo_ref,            # (L, H, H)  bf16
                         g1_ref, be1_ref,   # (L, 1, H)  f32
                         w1_ref, b1_ref,    # (L, H, FFN) bf16, (L, 1, FFN) f32
                         w2_ref, b2_ref,    # (L, FFN, H) bf16, (L, 1, H)   f32
                         g2_ref, be2_ref,   # (L, 1, H)  f32
                         out_ref):          # (S, H)  f32
    b = pl.program_id(0)
    vl = vlen_ref[b]
    # additive key mask from valid_lens, built in-kernel (0 where key < valid_len,
    # else -1e6; equivalent to the reference's jnp.where replacement for bounded scores)
    kpos = jax.lax.broadcasted_iota(jnp.int32, (S, S), 1)
    mask = jnp.where(kpos < vl, 0.0, NEG_INF).astype(jnp.float32)   # (S, S)

    x = x_ref[...]                                                  # (S, H) f32

    for l in range(NUM_LAYERS):      # static unroll: layers fused, x stays resident
        xb = x.astype(jnp.bfloat16)

        # fused Q/K/V projection: one (S,H)@(H,3H) matmul, 1/sqrt(DH) already in Wq
        qkv = jnp.dot(xb, wqkv_ref[l], preferred_element_type=jnp.float32)  # (S, 3H)
        q = qkv[:, :H]
        k = qkv[:, H:2 * H]
        v = qkv[:, 2 * H:]

        # per-head scaled dot-product attention (static lane slices, DH = 8)
        heads = []
        for h in range(NH):
            sl = slice(h * DH, (h + 1) * DH)
            qh = q[:, sl].astype(jnp.bfloat16)
            kh = k[:, sl].astype(jnp.bfloat16)
            vh = v[:, sl].astype(jnp.bfloat16)
            s = jax.lax.dot_general(qh, kh, (((1,), (1,)), ((), ())),
                                    preferred_element_type=jnp.float32)  # q @ k.T
            s = s + mask
            s = s - jnp.max(s, axis=-1, keepdims=True)
            p = jnp.exp(s)
            p = p / jnp.sum(p, axis=-1, keepdims=True)          # exact softmax
            heads.append(jnp.dot(p.astype(jnp.bfloat16), vh,
                                 preferred_element_type=jnp.float32))    # (S, DH)

        # concat heads (== transpose_output) then ONE output projection matmul
        attn = jnp.concatenate(heads, axis=-1)                  # (S, H)
        o = jnp.dot(attn.astype(jnp.bfloat16), wo_ref[l],
                    preferred_element_type=jnp.float32)         # (S, H)

        # AddNorm 1 (float32)
        y = x + o
        mu = jnp.mean(y, axis=-1, keepdims=True)
        d = y - mu
        var = jnp.mean(d * d, axis=-1, keepdims=True)
        y = d * jax.lax.rsqrt(var + LN_EPS) * g1_ref[l] + be1_ref[l]

        # position-wise FFN (bf16 matmul inputs, f32 accumulate / bias / relu)
        h1 = jnp.dot(y.astype(jnp.bfloat16), w1_ref[l],
                     preferred_element_type=jnp.float32) + b1_ref[l]
        h1 = jnp.maximum(h1, 0.0)
        f = jnp.dot(h1.astype(jnp.bfloat16), w2_ref[l],
                    preferred_element_type=jnp.float32) + b2_ref[l]

        # AddNorm 2
        z = y + f
        mu2 = jnp.mean(z, axis=-1, keepdims=True)
        d2 = z - mu2
        var2 = jnp.mean(d2 * d2, axis=-1, keepdims=True)
        x = d2 * jax.lax.rsqrt(var2 + LN_EPS) * g2_ref[l] + be2_ref[l]

    out_ref[...] = x


def _const_spec(shape):
    nd = len(shape)
    return pl.BlockSpec(shape, lambda b, vl, _nd=nd: (0,) * _nd)


def encoder_stack_pallas(x2d, valid_lens, stacked):
    """All encoder blocks, one sequence per grid step (parallel over batch)."""
    weight_specs = [_const_spec(w.shape) for w in stacked]
    grid_spec = pltpu.PrefetchScalarGridSpec(
        num_scalar_prefetch=1,                          # valid_lens -> SMEM
        grid=(B,),
        in_specs=[pl.BlockSpec((S, H), lambda b, vl: (b, 0))] + weight_specs,
        out_specs=pl.BlockSpec((S, H), lambda b, vl: (b, 0)),
    )
    return pl.pallas_call(
        encoder_stack_kernel,
        out_shape=jax.ShapeDtypeStruct((B * S, H), jnp.float32),
        grid_spec=grid_spec,
        compiler_params=pltpu.CompilerParams(dimension_semantics=("parallel",)),
    )(valid_lens, x2d, *stacked)


# ---------------- parameter init (deterministic, synthetic) ----------------------
def init_params(key):
    keys = jax.random.split(key, 8)

    def layer_params(k):
        ks = jax.random.split(k, 7)
        s = 0.1
        return dict(
            wq=jax.random.normal(ks[0], (H, H), jnp.float32) * s,   # stored as (in, out)
            wk=jax.random.normal(ks[1], (H, H), jnp.float32) * s,
            wv=jax.random.normal(ks[2], (H, H), jnp.float32) * s,
            wo=jax.random.normal(ks[3], (H, H), jnp.float32) * s,
            g1=jnp.ones((1, H), jnp.float32),
            b1_ln=jnp.zeros((1, H), jnp.float32),
            w1=jax.random.normal(ks[4], (H, FFN), jnp.float32) * s,
            b1=jax.random.normal(ks[5], (1, FFN), jnp.float32) * s,
            w2=jax.random.normal(ks[6], (FFN, H), jnp.float32) * s,
            b2=jnp.zeros((1, H), jnp.float32),
            g2=jnp.ones((1, H), jnp.float32),
            b2_ln=jnp.zeros((1, H), jnp.float32),
        )

    embedding = jax.random.normal(keys[0], (VOCAB, H), jnp.float32) * 0.1
    blocks = [layer_params(keys[1 + i]) for i in range(NUM_LAYERS)]
    return embedding, blocks


def prepare_stacked_params(blocks):
    """Init-time weight prep (runs ONCE, outside the jitted forward):
    stack layers, fuse Q/K/V, fold 1/sqrt(DH) into Wq, cast MXU operands to bf16,
    keep lane-dense (H / 3H / FFN) minor dims."""
    scale = 1.0 / math.sqrt(DH)
    wqkv = jnp.stack(
        [jnp.concatenate([blk["wq"] * scale, blk["wk"], blk["wv"]], axis=1)
         for blk in blocks], axis=0).astype(jnp.bfloat16)                 # (L, H, 3H)
    wo = jnp.stack([blk["wo"] for blk in blocks], axis=0).astype(jnp.bfloat16)  # (L, H, H)

    def st(name, dtype=jnp.float32):
        return jnp.stack([blk[name] for blk in blocks], axis=0).astype(dtype)

    return (wqkv, wo,
            st("g1"), st("b1_ln"),
            st("w1", jnp.bfloat16), st("b1"),
            st("w2", jnp.bfloat16), st("b2"),
            st("g2"), st("b2_ln"))


def positional_encoding(max_len, num_hiddens):
    pos = np.arange(max_len, dtype=np.float32).reshape(-1, 1)
    div = np.power(10000.0, np.arange(0, num_hiddens, 2, dtype=np.float32) / num_hiddens)
    X = pos / div
    P = np.zeros((1, max_len, num_hiddens), dtype=np.float32)
    P[:, :, 0::2] = np.sin(X)
    P[:, :, 1::2] = np.cos(X)
    return jnp.asarray(P)


# ---------------- full forward (embedding + pos-enc glue, fused Pallas stack) -----
def transformer_encoder_forward(tokens, valid_lens, embedding, stacked, P):
    # TODO(synk): embedding gather + positional add kept as plain-JAX glue (tiny);
    # nn.Dropout layers are identity (inference mode).
    x = embedding[tokens] * math.sqrt(H) + P[:, :tokens.shape[1], :]   # (B, S, H)
    x2d = x.astype(jnp.float32).reshape(B * S, H)
    out = encoder_stack_pallas(x2d, valid_lens, stacked)
    return out.reshape(B, S, H)


# ---------------- pure-JAX float32 reference (module semantics) -------------------
def reference_forward(tokens, valid_lens, embedding, blocks, P):
    x = embedding[tokens] * math.sqrt(H) + P[:, :tokens.shape[1], :]
    for prm in blocks:
        q = x @ prm["wq"]; k = x @ prm["wk"]; v = x @ prm["wv"]
        qh = q.reshape(B, S, NH, DH).transpose(0, 2, 1, 3)
        kh = k.reshape(B, S, NH, DH).transpose(0, 2, 1, 3)
        vh = v.reshape(B, S, NH, DH).transpose(0, 2, 1, 3)
        sc = jnp.einsum("bhqd,bhkd->bhqk", qh, kh) / math.sqrt(DH)
        kidx = jnp.arange(S)[None, None, None, :]
        sc = jnp.where(kidx < valid_lens[:, None, None, None], sc, NEG_INF)
        p = jax.nn.softmax(sc, axis=-1)
        attn = jnp.einsum("bhqk,bhkd->bhqd", p, vh)
        attn = attn.transpose(0, 2, 1, 3).reshape(B, S, H)
        o = attn @ prm["wo"]
        y = x + o
        mu = y.mean(-1, keepdims=True); var = ((y - mu) ** 2).mean(-1, keepdims=True)
        y = (y - mu) / jnp.sqrt(var + LN_EPS) * prm["g1"][0] + prm["b1_ln"][0]
        f = jnp.maximum(y @ prm["w1"] + prm["b1"][0], 0.0) @ prm["w2"] + prm["b2"][0]
        z = y + f
        mu2 = z.mean(-1, keepdims=True); var2 = ((z - mu2) ** 2).mean(-1, keepdims=True)
        x = (z - mu2) / jnp.sqrt(var2 + LN_EPS) * prm["g2"][0] + prm["b2_ln"][0]
    return x


if __name__ == "__main__":
    key = jax.random.PRNGKey(0)
    k_tok, k_par = jax.random.split(key)

    tokens = jax.random.randint(k_tok, (B, S), 0, VOCAB, dtype=jnp.int32)
    valid_lens = jnp.array([5, 8], dtype=jnp.int32)

    embedding, blocks = init_params(k_par)
    P = positional_encoding(1000, H)
    stacked = prepare_stacked_params(blocks)   # once at init, outside the jitted path

    fwd = jax.jit(transformer_encoder_forward)
    out = jax.block_until_ready(fwd(tokens, valid_lens, embedding, stacked, P))

    ref = reference_forward(tokens, valid_lens, embedding, blocks, P)
    assert out.shape == (B, S, H)
    # Kernel uses bf16 matmul inputs with f32 accumulation; reference is pure f32.
    np.testing.assert_allclose(np.asarray(out), np.asarray(ref), atol=2.5e-2, rtol=2.5e-2)

    print("KERNEL_OK")
</pallas_src>

<mosaic_0001>
module attributes {stable_mosaic.version = 11 : i64} {
  func.func @encoder_stack_kernel(%arg0: i32, %arg1: memref<2xi32, #tpu.memory_space<smem>>, %arg2: memref<8x32xf32, #tpu.memory_space<vmem>>, %arg3: memref<2x32x96xbf16, #tpu.memory_space<vmem>>, %arg4: memref<2x32x32xbf16, #tpu.memory_space<vmem>>, %arg5: memref<2x1x32xf32, #tpu.memory_space<vmem>>, %arg6: memref<2x1x32xf32, #tpu.memory_space<vmem>>, %arg7: memref<2x32x64xbf16, #tpu.memory_space<vmem>>, %arg8: memref<2x1x64xf32, #tpu.memory_space<vmem>>, %arg9: memref<2x64x32xbf16, #tpu.memory_space<vmem>>, %arg10: memref<2x1x32xf32, #tpu.memory_space<vmem>>, %arg11: memref<2x1x32xf32, #tpu.memory_space<vmem>>, %arg12: memref<2x1x32xf32, #tpu.memory_space<vmem>>, %arg13: memref<8x32xf32, #tpu.memory_space<vmem>>) attributes {dimension_semantics = [#tpu.dimension_semantics<parallel>], iteration_bounds = array<i64: 2>, scalar_prefetch = 1 : i64, scratch_operands = 0 : i64, tpu.core_type = #tpu.core_type<tc>, window_params = [{transform_indices = @transform_0, window_bounds = array<i64: 8, 32>}, {pipeline_mode = #tpu.pipeline_mode<synchronous>, transform_indices = @transform_1, window_bounds = array<i64: 2, 32, 96>}, {pipeline_mode = #tpu.pipeline_mode<synchronous>, transform_indices = @transform_2, window_bounds = array<i64: 2, 32, 32>}, {pipeline_mode = #tpu.pipeline_mode<synchronous>, transform_indices = @transform_3, window_bounds = array<i64: 2, 1, 32>}, {pipeline_mode = #tpu.pipeline_mode<synchronous>, transform_indices = @transform_4, window_bounds = array<i64: 2, 1, 32>}, {pipeline_mode = #tpu.pipeline_mode<synchronous>, transform_indices = @transform_5, window_bounds = array<i64: 2, 32, 64>}, {pipeline_mode = #tpu.pipeline_mode<synchronous>, transform_indices = @transform_6, window_bounds = array<i64: 2, 1, 64>}, {pipeline_mode = #tpu.pipeline_mode<synchronous>, transform_indices = @transform_7, window_bounds = array<i64: 2, 64, 32>}, {pipeline_mode = #tpu.pipeline_mode<synchronous>, transform_indices = @transform_8, window_bounds = array<i64: 2, 1, 32>}, {pipeline_mode = #tpu.pipeline_mode<synchronous>, transform_indices = @transform_9, window_bounds = array<i64: 2, 1, 32>}, {pipeline_mode = #tpu.pipeline_mode<synchronous>, transform_indices = @transform_10, window_bounds = array<i64: 2, 1, 32>}, {transform_indices = @transform_11, window_bounds = array<i64: 8, 32>}]} {
    %0 = arith.index_cast %arg0 : i32 to index
    %1 = memref.load %arg1[%0] : memref<2xi32, #tpu.memory_space<smem>>
    %2 = tpu.iota {dimensions = array<i32: 1>} : vector<8x8xi32>
    %3 = vector.broadcast %1 : i32 to vector<8x8xi32>
    %4 = arith.cmpi slt, %2, %3 : vector<8x8xi32>
    %cst = arith.constant 0.000000e+00 : f32
    %cst_0 = arith.constant -1.000000e+06 : f32
    %5 = vector.broadcast %cst : f32 to vector<8x8xf32>
    %6 = vector.broadcast %cst_0 : f32 to vector<8x8xf32>
    %7 = arith.select %4, %5, %6 : vector<8x8xi1>, vector<8x8xf32>
    %c0 = arith.constant 0 : index
    %c0_1 = arith.constant 0 : index
    %8 = vector.load %arg2[%c0, %c0_1] : memref<8x32xf32, #tpu.memory_space<vmem>>, vector<8x32xf32>
    %9 = arith.truncf %8 : vector<8x32xf32> to vector<8x32xbf16>
    %c0_2 = arith.constant 0 : index
    %c0_3 = arith.constant 0 : index
    %c0_4 = arith.constant 0 : index
    %10 = vector.load %arg3[%c0_2, %c0_3, %c0_4] : memref<2x32x96xbf16, #tpu.memory_space<vmem>>, vector<1x32x96xbf16>
    %11 = vector.shape_cast %10 : vector<1x32x96xbf16> to vector<32x96xbf16>
    %cst_5 = arith.constant dense<0.000000e+00> : vector<8x96xf32>
    %12 = tpu.matmul %9, %11, %cst_5 {dimension_numbers = #tpu.dot_dimension_numbers<[1], [0], [0], [1], [0, 0, 1, 1], [], []>} : vector<8x32xbf16>, vector<32x96xbf16>, vector<8x96xf32> -> vector<8x96xf32>
    %13 = vector.extract_strided_slice %12 {offsets = [0, 0], sizes = [8, 32], strides = [1, 1]} : vector<8x96xf32> to vector<8x32xf32>
    %14 = vector.extract_strided_slice %12 {offsets = [0, 32], sizes = [8, 32], strides = [1, 1]} : vector<8x96xf32> to vector<8x32xf32>
    %15 = vector.extract_strided_slice %12 {offsets = [0, 64], sizes = [8, 32], strides = [1, 1]} : vector<8x96xf32> to vector<8x32xf32>
    %16 = vector.extract_strided_slice %13 {offsets = [0, 0], sizes = [8, 8], strides = [1, 1]} : vector<8x32xf32> to vector<8x8xf32>
    %17 = arith.truncf %16 : vector<8x8xf32> to vector<8x8xbf16>
    %18 = vector.extract_strided_slice %14 {offsets = [0, 0], sizes = [8, 8], strides = [1, 1]} : vector<8x32xf32> to vector<8x8xf32>
    %19 = arith.truncf %18 : vector<8x8xf32> to vector<8x8xbf16>
    %20 = vector.extract_strided_slice %15 {offsets = [0, 0], sizes = [8, 8], strides = [1, 1]} : vector<8x32xf32> to vector<8x8xf32>
    %21 = arith.truncf %20 : vector<8x8xf32> to vector<8x8xbf16>
    %cst_6 = arith.constant dense<0.000000e+00> : vector<8x8xf32>
    %22 = tpu.matmul %17, %19, %cst_6 {dimension_numbers = #tpu.dot_dimension_numbers<[1], [1], [0], [0], [0, 0, 1, 0], [], []>} : vector<8x8xbf16>, vector<8x8xbf16>, vector<8x8xf32> -> vector<8x8xf32>
    %23 = arith.addf %22, %7 : vector<8x8xf32>
    %cst_7 = arith.constant dense<0xFF800000> : vector<8xf32>
    %24 = vector.multi_reduction <maximumf>, %23, %cst_7 [1] : vector<8x8xf32> to vector<8xf32>
    %25 = vector.shape_cast %24 : vector<8xf32> to vector<8x1xf32>
    %26 = vector.broadcast %25 : vector<8x1xf32> to vector<8x8xf32>
    %27 = arith.subf %23, %26 : vector<8x8xf32>
    %28 = math.exp %27 : vector<8x8xf32>
    %cst_8 = arith.constant dense<0.000000e+00> : vector<8xf32>
    %29 = vector.multi_reduction <add>, %28, %cst_8 [1] : vector<8x8xf32> to vector<8xf32>
    %30 = vector.shape_cast %29 : vector<8xf32> to vector<8x1xf32>
    %31 = vector.broadcast %30 : vector<8x1xf32> to vector<8x8xf32>
    %32 = arith.divf %28, %31 : vector<8x8xf32>
    %33 = arith.truncf %32 : vector<8x8xf32> to vector<8x8xbf16>
    %cst_9 = arith.constant dense<0.000000e+00> : vector<8x8xf32>
    %34 = tpu.matmul %33, %21, %cst_9 {dimension_numbers = #tpu.dot_dimension_numbers<[1], [0], [0], [1], [0, 0, 1, 1], [], []>} : vector<8x8xbf16>, vector<8x8xbf16>, vector<8x8xf32> -> vector<8x8xf32>
    %35 = vector.extract_strided_slice %13 {offsets = [0, 8], sizes = [8, 8], strides = [1, 1]} : vector<8x32xf32> to vector<8x8xf32>
    %36 = arith.truncf %35 : vector<8x8xf32> to vector<8x8xbf16>
    %37 = vector.extract_strided_slice %14 {offsets = [0, 8], sizes = [8, 8], strides = [1, 1]} : vector<8x32xf32> to vector<8x8xf32>
    %38 = arith.truncf %37 : vector<8x8xf32> to vector<8x8xbf16>
    %39 = vector.extract_strided_slice %15 {offsets = [0, 8], sizes = [8, 8], strides = [1, 1]} : vector<8x32xf32> to vector<8x8xf32>
    %40 = arith.truncf %39 : vector<8x8xf32> to vector<8x8xbf16>
    %cst_10 = arith.constant dense<0.000000e+00> : vector<8x8xf32>
    %41 = tpu.matmul %36, %38, %cst_10 {dimension_numbers = #tpu.dot_dimension_numbers<[1], [1], [0], [0], [0, 0, 1, 0], [], []>} : vector<8x8xbf16>, vector<8x8xbf16>, vector<8x8xf32> -> vector<8x8xf32>
    %42 = arith.addf %41, %7 : vector<8x8xf32>
    %cst_11 = arith.constant dense<0xFF800000> : vector<8xf32>
    %43 = vector.multi_reduction <maximumf>, %42, %cst_11 [1] : vector<8x8xf32> to vector<8xf32>
    %44 = vector.shape_cast %43 : vector<8xf32> to vector<8x1xf32>
    %45 = vector.broadcast %44 : vector<8x1xf32> to vector<8x8xf32>
    %46 = arith.subf %42, %45 : vector<8x8xf32>
    %47 = math.exp %46 : vector<8x8xf32>
    %cst_12 = arith.constant dense<0.000000e+00> : vector<8xf32>
    %48 = vector.multi_reduction <add>, %47, %cst_12 [1] : vector<8x8xf32> to vector<8xf32>
    %49 = vector.shape_cast %48 : vector<8xf32> to vector<8x1xf32>
    %50 = vector.broadcast %49 : vector<8x1xf32> to vector<8x8xf32>
    %51 = arith.divf %47, %50 : vector<8x8xf32>
    %52 = arith.truncf %51 : vector<8x8xf32> to vector<8x8xbf16>
    %cst_13 = arith.constant dense<0.000000e+00> : vector<8x8xf32>
    %53 = tpu.matmul %52, %40, %cst_13 {dimension_numbers = #tpu.dot_dimension_numbers<[1], [0], [0], [1], [0, 0, 1, 1], [], []>} : vector<8x8xbf16>, vector<8x8xbf16>, vector<8x8xf32> -> vector<8x8xf32>
    %54 = vector.extract_strided_slice %13 {offsets = [0, 16], sizes = [8, 8], strides = [1, 1]} : vector<8x32xf32> to vector<8x8xf32>
    %55 = arith.truncf %54 : vector<8x8xf32> to vector<8x8xbf16>
    %56 = vector.extract_strided_slice %14 {offsets = [0, 16], sizes = [8, 8], strides = [1, 1]} : vector<8x32xf32> to vector<8x8xf32>
    %57 = arith.truncf %56 : vector<8x8xf32> to vector<8x8xbf16>
    %58 = vector.extract_strided_slice %15 {offsets = [0, 16], sizes = [8, 8], strides = [1, 1]} : vector<8x32xf32> to vector<8x8xf32>
    %59 = arith.truncf %58 : vector<8x8xf32> to vector<8x8xbf16>
    %cst_14 = arith.constant dense<0.000000e+00> : vector<8x8xf32>
    %60 = tpu.matmul %55, %57, %cst_14 {dimension_numbers = #tpu.dot_dimension_numbers<[1], [1], [0], [0], [0, 0, 1, 0], [], []>} : vector<8x8xbf16>, vector<8x8xbf16>, vector<8x8xf32> -> vector<8x8xf32>
    %61 = arith.addf %60, %7 : vector<8x8xf32>
    %cst_15 = arith.constant dense<0xFF800000> : vector<8xf32>
    %62 = vector.multi_reduction <maximumf>, %61, %cst_15 [1] : vector<8x8xf32> to vector<8xf32>
    %63 = vector.shape_cast %62 : vector<8xf32> to vector<8x1xf32>
    %64 = vector.broadcast %63 : vector<8x1xf32> to vector<8x8xf32>
    %65 = arith.subf %61, %64 : vector<8x8xf32>
    %66 = math.exp %65 : vector<8x8xf32>
    %cst_16 = arith.constant dense<0.000000e+00> : vector<8xf32>
    %67 = vector.multi_reduction <add>, %66, %cst_16 [1] : vector<8x8xf32> to vector<8xf32>
    %68 = vector.shape_cast %67 : vector<8xf32> to vector<8x1xf32>
    %69 = vector.broadcast %68 : vector<8x1xf32> to vector<8x8xf32>
    %70 = arith.divf %66, %69 : vector<8x8xf32>
    %71 = arith.truncf %70 : vector<8x8xf32> to vector<8x8xbf16>
    %cst_17 = arith.constant dense<0.000000e+00> : vector<8x8xf32>
    %72 = tpu.matmul %71, %59, %cst_17 {dimension_numbers = #tpu.dot_dimension_numbers<[1], [0], [0], [1], [0, 0, 1, 1], [], []>} : vector<8x8xbf16>, vector<8x8xbf16>, vector<8x8xf32> -> vector<8x8xf32>
    %73 = vector.extract_strided_slice %13 {offsets = [0, 24], sizes = [8, 8], strides = [1, 1]} : vector<8x32xf32> to vector<8x8xf32>
    %74 = arith.truncf %73 : vector<8x8xf32> to vector<8x8xbf16>
    %75 = vector.extract_strided_slice %14 {offsets = [0, 24], sizes = [8, 8], strides = [1, 1]} : vector<8x32xf32> to vector<8x8xf32>
    %76 = arith.truncf %75 : vector<8x8xf32> to vector<8x8xbf16>
    %77 = vector.extract_strided_slice %15 {offsets = [0, 24], sizes = [8, 8], strides = [1, 1]} : vector<8x32xf32> to vector<8x8xf32>
    %78 = arith.truncf %77 : vector<8x8xf32> to vector<8x8xbf16>
    %cst_18 = arith.constant dense<0.000000e+00> : vector<8x8xf32>
    %79 = tpu.matmul %74, %76, %cst_18 {dimension_numbers = #tpu.dot_dimension_numbers<[1], [1], [0], [0], [0, 0, 1, 0], [], []>} : vector<8x8xbf16>, vector<8x8xbf16>, vector<8x8xf32> -> vector<8x8xf32>
    %80 = arith.addf %79, %7 : vector<8x8xf32>
    %cst_19 = arith.constant dense<0xFF800000> : vector<8xf32>
    %81 = vector.multi_reduction <maximumf>, %80, %cst_19 [1] : vector<8x8xf32> to vector<8xf32>
    %82 = vector.shape_cast %81 : vector<8xf32> to vector<8x1xf32>
    %83 = vector.broadcast %82 : vector<8x1xf32> to vector<8x8xf32>
    %84 = arith.subf %80, %83 : vector<8x8xf32>
    %85 = math.exp %84 : vector<8x8xf32>
    %cst_20 = arith.constant dense<0.000000e+00> : vector<8xf32>
    %86 = vector.multi_reduction <add>, %85, %cst_20 [1] : vector<8x8xf32> to vector<8xf32>
    %87 = vector.shape_cast %86 : vector<8xf32> to vector<8x1xf32>
    %88 = vector.broadcast %87 : vector<8x1xf32> to vector<8x8xf32>
    %89 = arith.divf %85, %88 : vector<8x8xf32>
    %90 = arith.truncf %89 : vector<8x8xf32> to vector<8x8xbf16>
    %cst_21 = arith.constant dense<0.000000e+00> : vector<8x8xf32>
    %91 = tpu.matmul %90, %78, %cst_21 {dimension_numbers = #tpu.dot_dimension_numbers<[1], [0], [0], [1], [0, 0, 1, 1], [], []>} : vector<8x8xbf16>, vector<8x8xbf16>, vector<8x8xf32> -> vector<8x8xf32>
    %92 = tpu.concatenate %34, %53, %72, %91 in 1 : vector<8x8xf32>, vector<8x8xf32>, vector<8x8xf32>, vector<8x8xf32> -> vector<8x32xf32>
    %93 = arith.truncf %92 : vector<8x32xf32> to vector<8x32xbf16>
    %c0_22 = arith.constant 0 : index
    %c0_23 = arith.constant 0 : index
    %c0_24 = arith.constant 0 : index
    %94 = vector.load %arg4[%c0_22, %c0_23, %c0_24] : memref<2x32x32xbf16, #tpu.memory_space<vmem>>, vector<1x32x32xbf16>
    %95 = vector.shape_cast %94 : vector<1x32x32xbf16> to vector<32x32xbf16>
    %cst_25 = arith.constant dense<0.000000e+00> : vector<8x32xf32>
    %96 = tpu.matmul %93, %95, %cst_25 {dimension_numbers = #tpu.dot_dimension_numbers<[1], [0], [0], [1], [0, 0, 1, 1], [], []>} : vector<8x32xbf16>, vector<32x32xbf16>, vector<8x32xf32> -> vector<8x32xf32>
    %97 = arith.addf %8, %96 : vector<8x32xf32>
    %cst_26 = arith.constant dense<0.000000e+00> : vector<8xf32>
    %98 = vector.multi_reduction <add>, %97, %cst_26 [1] : vector<8x32xf32> to vector<8xf32>
    %99 = vector.shape_cast %98 : vector<8xf32> to vector<8x1xf32>
    %cst_27 = arith.constant 3.200000e+01 : f32
    %100 = vector.broadcast %cst_27 : f32 to vector<8x1xf32>
    %101 = arith.divf %99, %100 : vector<8x1xf32>
    %102 = vector.broadcast %101 : vector<8x1xf32> to vector<8x32xf32>
    %103 = arith.subf %97, %102 : vector<8x32xf32>
    %104 = arith.mulf %103, %103 : vector<8x32xf32>
    %cst_28 = arith.constant dense<0.000000e+00> : vector<8xf32>
    %105 = vector.multi_reduction <add>, %104, %cst_28 [1] : vector<8x32xf32> to vector<8xf32>
    %106 = vector.shape_cast %105 : vector<8xf32> to vector<8x1xf32>
    %cst_29 = arith.constant 3.200000e+01 : f32
    %107 = vector.broadcast %cst_29 : f32 to vector<8x1xf32>
    %108 = arith.divf %106, %107 : vector<8x1xf32>
    %cst_30 = arith.constant 9.99999974E-6 : f32
    %109 = vector.broadcast %cst_30 : f32 to vector<8x1xf32>
    %110 = arith.addf %108, %109 : vector<8x1xf32>
    %111 = math.rsqrt %110 : vector<8x1xf32>
    %112 = vector.broadcast %111 : vector<8x1xf32> to vector<8x32xf32>
    %113 = arith.mulf %103, %112 : vector<8x32xf32>
    %c0_31 = arith.constant 0 : index
    %c0_32 = arith.constant 0 : index
    %c0_33 = arith.constant 0 : index
    %114 = vector.load %arg5[%c0_31, %c0_32, %c0_33] : memref<2x1x32xf32, #tpu.memory_space<vmem>>, vector<1x1x32xf32>
    %115 = vector.shape_cast %114 : vector<1x1x32xf32> to vector<1x32xf32>
    %116 = vector.broadcast %115 : vector<1x32xf32> to vector<8x32xf32>
    %117 = arith.mulf %113, %116 : vector<8x32xf32>
    %c0_34 = arith.constant 0 : index
    %c0_35 = arith.constant 0 : index
    %c0_36 = arith.constant 0 : index
    %118 = vector.load %arg6[%c0_34, %c0_35, %c0_36] : memref<2x1x32xf32, #tpu.memory_space<vmem>>, vector<1x1x32xf32>
    %119 = vector.shape_cast %118 : vector<1x1x32xf32> to vector<1x32xf32>
    %120 = vector.broadcast %119 : vector<1x32xf32> to vector<8x32xf32>
    %121 = arith.addf %117, %120 : vector<8x32xf32>
    %122 = arith.truncf %121 : vector<8x32xf32> to vector<8x32xbf16>
    %c0_37 = arith.constant 0 : index
    %c0_38 = arith.constant 0 : index
    %c0_39 = arith.constant 0 : index
    %123 = vector.load %arg7[%c0_37, %c0_38, %c0_39] : memref<2x32x64xbf16, #tpu.memory_space<vmem>>, vector<1x32x64xbf16>
    %124 = vector.shape_cast %123 : vector<1x32x64xbf16> to vector<32x64xbf16>
    %cst_40 = arith.constant dense<0.000000e+00> : vector<8x64xf32>
    %125 = tpu.matmul %122, %124, %cst_40 {dimension_numbers = #tpu.dot_dimension_numbers<[1], [0], [0], [1], [0, 0, 1, 1], [], []>} : vector<8x32xbf16>, vector<32x64xbf16>, vector<8x64xf32> -> vector<8x64xf32>
    %c0_41 = arith.constant 0 : index
    %c0_42 = arith.constant 0 : index
    %c0_43 = arith.constant 0 : index
    %126 = vector.load %arg8[%c0_41, %c0_42, %c0_43] : memref<2x1x64xf32, #tpu.memory_space<vmem>>, vector<1x1x64xf32>
    %127 = vector.shape_cast %126 : vector<1x1x64xf32> to vector<1x64xf32>
    %128 = vector.broadcast %127 : vector<1x64xf32> to vector<8x64xf32>
    %129 = arith.addf %125, %128 : vector<8x64xf32>
    %cst_44 = arith.constant 0.000000e+00 : f32
    %130 = vector.broadcast %cst_44 : f32 to vector<8x64xf32>
    %131 = arith.maximumf %129, %130 : vector<8x64xf32>
    %132 = arith.truncf %131 : vector<8x64xf32> to vector<8x64xbf16>
    %c0_45 = arith.constant 0 : index
    %c0_46 = arith.constant 0 : index
    %c0_47 = arith.constant 0 : index
    %133 = vector.load %arg9[%c0_45, %c0_46, %c0_47] : memref<2x64x32xbf16, #tpu.memory_space<vmem>>, vector<1x64x32xbf16>
    %134 = vector.shape_cast %133 : vector<1x64x32xbf16> to vector<64x32xbf16>
    %cst_48 = arith.constant dense<0.000000e+00> : vector<8x32xf32>
    %135 = tpu.matmul %132, %134, %cst_48 {dimension_numbers = #tpu.dot_dimension_numbers<[1], [0], [0], [1], [0, 0, 1, 1], [], []>} : vector<8x64xbf16>, vector<64x32xbf16>, vector<8x32xf32> -> vector<8x32xf32>
    %c0_49 = arith.constant 0 : index
    %c0_50 = arith.constant 0 : index
    %c0_51 = arith.constant 0 : index
    %136 = vector.load %arg10[%c0_49, %c0_50, %c0_51] : memref<2x1x32xf32, #tpu.memory_space<vmem>>, vector<1x1x32xf32>
    %137 = vector.shape_cast %136 : vector<1x1x32xf32> to vector<1x32xf32>
    %138 = vector.broadcast %137 : vector<1x32xf32> to vector<8x32xf32>
    %139 = arith.addf %135, %138 : vector<8x32xf32>
    %140 = arith.addf %121, %139 : vector<8x32xf32>
    %cst_52 = arith.constant dense<0.000000e+00> : vector<8xf32>
    %141 = vector.multi_reduction <add>, %140, %cst_52 [1] : vector<8x32xf32> to vector<8xf32>
    %142 = vector.shape_cast %141 : vector<8xf32> to vector<8x1xf32>
    %cst_53 = arith.constant 3.200000e+01 : f32
    %143 = vector.broadcast %cst_53 : f32 to vector<8x1xf32>
    %144 = arith.divf %142, %143 : vector<8x1xf32>
    %145 = vector.broadcast %144 : vector<8x1xf32> to vector<8x32xf32>
    %146 = arith.subf %140, %145 : vector<8x32xf32>
    %147 = arith.mulf %146, %146 : vector<8x32xf32>
    %cst_54 = arith.constant dense<0.000000e+00> : vector<8xf32>
    %148 = vector.multi_reduction <add>, %147, %cst_54 [1] : vector<8x32xf32> to vector<8xf32>
    %149 = vector.shape_cast %148 : vector<8xf32> to vector<8x1xf32>
    %cst_55 = arith.constant 3.200000e+01 : f32
    %150 = vector.broadcast %cst_55 : f32 to vector<8x1xf32>
    %151 = arith.divf %149, %150 : vector<8x1xf32>
    %cst_56 = arith.constant 9.99999974E-6 : f32
    %152 = vector.broadcast %cst_56 : f32 to vector<8x1xf32>
    %153 = arith.addf %151, %152 : vector<8x1xf32>
    %154 = math.rsqrt %153 : vector<8x1xf32>
    %155 = vector.broadcast %154 : vector<8x1xf32> to vector<8x32xf32>
    %156 = arith.mulf %146, %155 : vector<8x32xf32>
    %c0_57 = arith.constant 0 : index
    %c0_58 = arith.constant 0 : index
    %c0_59 = arith.constant 0 : index
    %157 = vector.load %arg11[%c0_57, %c0_58, %c0_59] : memref<2x1x32xf32, #tpu.memory_space<vmem>>, vector<1x1x32xf32>
    %158 = vector.shape_cast %157 : vector<1x1x32xf32> to vector<1x32xf32>
    %159 = vector.broadcast %158 : vector<1x32xf32> to vector<8x32xf32>
    %160 = arith.mulf %156, %159 : vector<8x32xf32>
    %c0_60 = arith.constant 0 : index
    %c0_61 = arith.constant 0 : index
    %c0_62 = arith.constant 0 : index
    %161 = vector.load %arg12[%c0_60, %c0_61, %c0_62] : memref<2x1x32xf32, #tpu.memory_space<vmem>>, vector<1x1x32xf32>
    %162 = vector.shape_cast %161 : vector<1x1x32xf32> to vector<1x32xf32>
    %163 = vector.broadcast %162 : vector<1x32xf32> to vector<8x32xf32>
    %164 = arith.addf %160, %163 : vector<8x32xf32>
    %165 = arith.truncf %164 : vector<8x32xf32> to vector<8x32xbf16>
    %c1 = arith.constant 1 : index
    %c0_63 = arith.constant 0 : index
    %c0_64 = arith.constant 0 : index
    %166 = vector.load %arg3[%c1, %c0_63, %c0_64] : memref<2x32x96xbf16, #tpu.memory_space<vmem>>, vector<1x32x96xbf16>
    %167 = vector.shape_cast %166 : vector<1x32x96xbf16> to vector<32x96xbf16>
    %cst_65 = arith.constant dense<0.000000e+00> : vector<8x96xf32>
    %168 = tpu.matmul %165, %167, %cst_65 {dimension_numbers = #tpu.dot_dimension_numbers<[1], [0], [0], [1], [0, 0, 1, 1], [], []>} : vector<8x32xbf16>, vector<32x96xbf16>, vector<8x96xf32> -> vector<8x96xf32>
    %169 = vector.extract_strided_slice %168 {offsets = [0, 0], sizes = [8, 32], strides = [1, 1]} : vector<8x96xf32> to vector<8x32xf32>
    %170 = vector.extract_strided_slice %168 {offsets = [0, 32], sizes = [8, 32], strides = [1, 1]} : vector<8x96xf32> to vector<8x32xf32>
    %171 = vector.extract_strided_slice %168 {offsets = [0, 64], sizes = [8, 32], strides = [1, 1]} : vector<8x96xf32> to vector<8x32xf32>
    %172 = vector.extract_strided_slice %169 {offsets = [0, 0], sizes = [8, 8], strides = [1, 1]} : vector<8x32xf32> to vector<8x8xf32>
    %173 = arith.truncf %172 : vector<8x8xf32> to vector<8x8xbf16>
    %174 = vector.extract_strided_slice %170 {offsets = [0, 0], sizes = [8, 8], strides = [1, 1]} : vector<8x32xf32> to vector<8x8xf32>
    %175 = arith.truncf %174 : vector<8x8xf32> to vector<8x8xbf16>
    %176 = vector.extract_strided_slice %171 {offsets = [0, 0], sizes = [8, 8], strides = [1, 1]} : vector<8x32xf32> to vector<8x8xf32>
    %177 = arith.truncf %176 : vector<8x8xf32> to vector<8x8xbf16>
    %cst_66 = arith.constant dense<0.000000e+00> : vector<8x8xf32>
    %178 = tpu.matmul %173, %175, %cst_66 {dimension_numbers = #tpu.dot_dimension_numbers<[1], [1], [0], [0], [0, 0, 1, 0], [], []>} : vector<8x8xbf16>, vector<8x8xbf16>, vector<8x8xf32> -> vector<8x8xf32>
    %179 = arith.addf %178, %7 : vector<8x8xf32>
    %cst_67 = arith.constant dense<0xFF800000> : vector<8xf32>
    %180 = vector.multi_reduction <maximumf>, %179, %cst_67 [1] : vector<8x8xf32> to vector<8xf32>
    %181 = vector.shape_cast %180 : vector<8xf32> to vector<8x1xf32>
    %182 = vector.broadcast %181 : vector<8x1xf32> to vector<8x8xf32>
    %183 = arith.subf %179, %182 : vector<8x8xf32>
    %184 = math.exp %183 : vector<8x8xf32>
    %cst_68 = arith.constant dense<0.000000e+00> : vector<8xf32>
    %185 = vector.multi_reduction <add>, %184, %cst_68 [1] : vector<8x8xf32> to vector<8xf32>
    %186 = vector.shape_cast %185 : vector<8xf32> to vector<8x1xf32>
    %187 = vector.broadcast %186 : vector<8x1xf32> to vector<8x8xf32>
    %188 = arith.divf %184, %187 : vector<8x8xf32>
    %189 = arith.truncf %188 : vector<8x8xf32> to vector<8x8xbf16>
    %cst_69 = arith.constant dense<0.000000e+00> : vector<8x8xf32>
    %190 = tpu.matmul %189, %177, %cst_69 {dimension_numbers = #tpu.dot_dimension_numbers<[1], [0], [0], [1], [0, 0, 1, 1], [], []>} : vector<8x8xbf16>, vector<8x8xbf16>, vector<8x8xf32> -> vector<8x8xf32>
    %191 = vector.extract_strided_slice %169 {offsets = [0, 8], sizes = [8, 8], strides = [1, 1]} : vector<8x32xf32> to vector<8x8xf32>
    %192 = arith.truncf %191 : vector<8x8xf32> to vector<8x8xbf16>
    %193 = vector.extract_strided_slice %170 {offsets = [0, 8], sizes = [8, 8], strides = [1, 1]} : vector<8x32xf32> to vector<8x8xf32>
    %194 = arith.truncf %193 : vector<8x8xf32> to vector<8x8xbf16>
    %195 = vector.extract_strided_slice %171 {offsets = [0, 8], sizes = [8, 8], strides = [1, 1]} : vector<8x32xf32> to vector<8x8xf32>
    %196 = arith.truncf %195 : vector<8x8xf32> to vector<8x8xbf16>
    %cst_70 = arith.constant dense<0.000000e+00> : vector<8x8xf32>
    %197 = tpu.matmul %192, %194, %cst_70 {dimension_numbers = #tpu.dot_dimension_numbers<[1], [1], [0], [0], [0, 0, 1, 0], [], []>} : vector<8x8xbf16>, vector<8x8xbf16>, vector<8x8xf32> -> vector<8x8xf32>
    %198 = arith.addf %197, %7 : vector<8x8xf32>
    %cst_71 = arith.constant dense<0xFF800000> : vector<8xf32>
    %199 = vector.multi_reduction <maximumf>, %198, %cst_71 [1] : vector<8x8xf32> to vector<8xf32>
    %200 = vector.shape_cast %199 : vector<8xf32> to vector<8x1xf32>
    %201 = vector.broadcast %200 : vector<8x1xf32> to vector<8x8xf32>
    %202 = arith.subf %198, %201 : vector<8x8xf32>
    %203 = math.exp %202 : vector<8x8xf32>
    %cst_72 = arith.constant dense<0.000000e+00> : vector<8xf32>
    %204 = vector.multi_reduction <add>, %203, %cst_72 [1] : vector<8x8xf32> to vector<8xf32>
    %205 = vector.shape_cast %204 : vector<8xf32> to vector<8x1xf32>
    %206 = vector.broadcast %205 : vector<8x1xf32> to vector<8x8xf32>
    %207 = arith.divf %203, %206 : vector<8x8xf32>
    %208 = arith.truncf %207 : vector<8x8xf32> to vector<8x8xbf16>
    %cst_73 = arith.constant dense<0.000000e+00> : vector<8x8xf32>
    %209 = tpu.matmul %208, %196, %cst_73 {dimension_numbers = #tpu.dot_dimension_numbers<[1], [0], [0], [1], [0, 0, 1, 1], [], []>} : vector<8x8xbf16>, vector<8x8xbf16>, vector<8x8xf32> -> vector<8x8xf32>
    %210 = vector.extract_strided_slice %169 {offsets = [0, 16], sizes = [8, 8], strides = [1, 1]} : vector<8x32xf32> to vector<8x8xf32>
    %211 = arith.truncf %210 : vector<8x8xf32> to vector<8x8xbf16>
    %212 = vector.extract_strided_slice %170 {offsets = [0, 16], sizes = [8, 8], strides = [1, 1]} : vector<8x32xf32> to vector<8x8xf32>
    %213 = arith.truncf %212 : vector<8x8xf32> to vector<8x8xbf16>
    %214 = vector.extract_strided_slice %171 {offsets = [0, 16], sizes = [8, 8], strides = [1, 1]} : vector<8x32xf32> to vector<8x8xf32>
    %215 = arith.truncf %214 : vector<8x8xf32> to vector<8x8xbf16>
    %cst_74 = arith.constant dense<0.000000e+00> : vector<8x8xf32>
    %216 = tpu.matmul %211, %213, %cst_74 {dimension_numbers = #tpu.dot_dimension_numbers<[1], [1], [0], [0], [0, 0, 1, 0], [], []>} : vector<8x8xbf16>, vector<8x8xbf16>, vector<8x8xf32> -> vector<8x8xf32>
    %217 = arith.addf %216, %7 : vector<8x8xf32>
    %cst_75 = arith.constant dense<0xFF800000> : vector<8xf32>
    %218 = vector.multi_reduction <maximumf>, %217, %cst_75 [1] : vector<8x8xf32> to vector<8xf32>
    %219 = vector.shape_cast %218 : vector<8xf32> to vector<8x1xf32>
    %220 = vector.broadcast %219 : vector<8x1xf32> to vector<8x8xf32>
    %221 = arith.subf %217, %220 : vector<8x8xf32>
    %222 = math.exp %221 : vector<8x8xf32>
    %cst_76 = arith.constant dense<0.000000e+00> : vector<8xf32>
    %223 = vector.multi_reduction <add>, %222, %cst_76 [1] : vector<8x8xf32> to vector<8xf32>
    %224 = vector.shape_cast %223 : vector<8xf32> to vector<8x1xf32>
    %225 = vector.broadcast %224 : vector<8x1xf32> to vector<8x8xf32>
    %226 = arith.divf %222, %225 : vector<8x8xf32>
    %227 = arith.truncf %226 : vector<8x8xf32> to vector<8x8xbf16>
    %cst_77 = arith.constant dense<0.000000e+00> : vector<8x8xf32>
    %228 = tpu.matmul %227, %215, %cst_77 {dimension_numbers = #tpu.dot_dimension_numbers<[1], [0], [0], [1], [0, 0, 1, 1], [], []>} : vector<8x8xbf16>, vector<8x8xbf16>, vector<8x8xf32> -> vector<8x8xf32>
    %229 = vector.extract_strided_slice %169 {offsets = [0, 24], sizes = [8, 8], strides = [1, 1]} : vector<8x32xf32> to vector<8x8xf32>
    %230 = arith.truncf %229 : vector<8x8xf32> to vector<8x8xbf16>
    %231 = vector.extract_strided_slice %170 {offsets = [0, 24], sizes = [8, 8], strides = [1, 1]} : vector<8x32xf32> to vector<8x8xf32>
    %232 = arith.truncf %231 : vector<8x8xf32> to vector<8x8xbf16>
    %233 = vector.extract_strided_slice %171 {offsets = [0, 24], sizes = [8, 8], strides = [1, 1]} : vector<8x32xf32> to vector<8x8xf32>
    %234 = arith.truncf %233 : vector<8x8xf32> to vector<8x8xbf16>
    %cst_78 = arith.constant dense<0.000000e+00> : vector<8x8xf32>
    %235 = tpu.matmul %230, %232, %cst_78 {dimension_numbers = #tpu.dot_dimension_numbers<[1], [1], [0], [0], [0, 0, 1, 0], [], []>} : vector<8x8xbf16>, vector<8x8xbf16>, vector<8x8xf32> -> vector<8x8xf32>
    %236 = arith.addf %235, %7 : vector<8x8xf32>
    %cst_79 = arith.constant dense<0xFF800000> : vector<8xf32>
    %237 = vector.multi_reduction <maximumf>, %236, %cst_79 [1] : vector<8x8xf32> to vector<8xf32>
    %238 = vector.shape_cast %237 : vector<8xf32> to vector<8x1xf32>
    %239 = vector.broadcast %238 : vector<8x1xf32> to vector<8x8xf32>
    %240 = arith.subf %236, %239 : vector<8x8xf32>
    %241 = math.exp %240 : vector<8x8xf32>
    %cst_80 = arith.constant dense<0.000000e+00> : vector<8xf32>
    %242 = vector.multi_reduction <add>, %241, %cst_80 [1] : vector<8x8xf32> to vector<8xf32>
    %243 = vector.shape_cast %242 : vector<8xf32> to vector<8x1xf32>
    %244 = vector.broadcast %243 : vector<8x1xf32> to vector<8x8xf32>
    %245 = arith.divf %241, %244 : vector<8x8xf32>
    %246 = arith.truncf %245 : vector<8x8xf32> to vector<8x8xbf16>
    %cst_81 = arith.constant dense<0.000000e+00> : vector<8x8xf32>
    %247 = tpu.matmul %246, %234, %cst_81 {dimension_numbers = #tpu.dot_dimension_numbers<[1], [0], [0], [1], [0, 0, 1, 1], [], []>} : vector<8x8xbf16>, vector<8x8xbf16>, vector<8x8xf32> -> vector<8x8xf32>
    %248 = tpu.concatenate %190, %209, %228, %247 in 1 : vector<8x8xf32>, vector<8x8xf32>, vector<8x8xf32>, vector<8x8xf32> -> vector<8x32xf32>
    %249 = arith.truncf %248 : vector<8x32xf32> to vector<8x32xbf16>
    %c1_82 = arith.constant 1 : index
    %c0_83 = arith.constant 0 : index
    %c0_84 = arith.constant 0 : index
    %250 = vector.load %arg4[%c1_82, %c0_83, %c0_84] : memref<2x32x32xbf16, #tpu.memory_space<vmem>>, vector<1x32x32xbf16>
    %251 = vector.shape_cast %250 : vector<1x32x32xbf16> to vector<32x32xbf16>
    %cst_85 = arith.constant dense<0.000000e+00> : vector<8x32xf32>
    %252 = tpu.matmul %249, %251, %cst_85 {dimension_numbers = #tpu.dot_dimension_numbers<[1], [0], [0], [1], [0, 0, 1, 1], [], []>} : vector<8x32xbf16>, vector<32x32xbf16>, vector<8x32xf32> -> vector<8x32xf32>
    %253 = arith.addf %164, %252 : vector<8x32xf32>
    %cst_86 = arith.constant dense<0.000000e+00> : vector<8xf32>
    %254 = vector.multi_reduction <add>, %253, %cst_86 [1] : vector<8x32xf32> to vector<8xf32>
    %255 = vector.shape_cast %254 : vector<8xf32> to vector<8x1xf32>
    %cst_87 = arith.constant 3.200000e+01 : f32
    %256 = vector.broadcast %cst_87 : f32 to vector<8x1xf32>
    %257 = arith.divf %255, %256 : vector<8x1xf32>
    %258 = vector.broadcast %257 : vector<8x1xf32> to vector<8x32xf32>
    %259 = arith.subf %253, %258 : vector<8x32xf32>
    %260 = arith.mulf %259, %259 : vector<8x32xf32>
    %cst_88 = arith.constant dense<0.000000e+00> : vector<8xf32>
    %261 = vector.multi_reduction <add>, %260, %cst_88 [1] : vector<8x32xf32> to vector<8xf32>
    %262 = vector.shape_cast %261 : vector<8xf32> to vector<8x1xf32>
    %cst_89 = arith.constant 3.200000e+01 : f32
    %263 = vector.broadcast %cst_89 : f32 to vector<8x1xf32>
    %264 = arith.divf %262, %263 : vector<8x1xf32>
    %cst_90 = arith.constant 9.99999974E-6 : f32
    %265 = vector.broadcast %cst_90 : f32 to vector<8x1xf32>
    %266 = arith.addf %264, %265 : vector<8x1xf32>
    %267 = math.rsqrt %266 : vector<8x1xf32>
    %268 = vector.broadcast %267 : vector<8x1xf32> to vector<8x32xf32>
    %269 = arith.mulf %259, %268 : vector<8x32xf32>
    %c1_91 = arith.constant 1 : index
    %c0_92 = arith.constant 0 : index
    %c0_93 = arith.constant 0 : index
    %270 = vector.load %arg5[%c1_91, %c0_92, %c0_93] : memref<2x1x32xf32, #tpu.memory_space<vmem>>, vector<1x1x32xf32>
    %271 = vector.shape_cast %270 : vector<1x1x32xf32> to vector<1x32xf32>
    %272 = vector.broadcast %271 : vector<1x32xf32> to vector<8x32xf32>
    %273 = arith.mulf %269, %272 : vector<8x32xf32>
    %c1_94 = arith.constant 1 : index
    %c0_95 = arith.constant 0 : index
    %c0_96 = arith.constant 0 : index
    %274 = vector.load %arg6[%c1_94, %c0_95, %c0_96] : memref<2x1x32xf32, #tpu.memory_space<vmem>>, vector<1x1x32xf32>
    %275 = vector.shape_cast %274 : vector<1x1x32xf32> to vector<1x32xf32>
    %276 = vector.broadcast %275 : vector<1x32xf32> to vector<8x32xf32>
    %277 = arith.addf %273, %276 : vector<8x32xf32>
    %278 = arith.truncf %277 : vector<8x32xf32> to vector<8x32xbf16>
    %c1_97 = arith.constant 1 : index
    %c0_98 = arith.constant 0 : index
    %c0_99 = arith.constant 0 : index
    %279 = vector.load %arg7[%c1_97, %c0_98, %c0_99] : memref<2x32x64xbf16, #tpu.memory_space<vmem>>, vector<1x32x64xbf16>
    %280 = vector.shape_cast %279 : vector<1x32x64xbf16> to vector<32x64xbf16>
    %cst_100 = arith.constant dense<0.000000e+00> : vector<8x64xf32>
    %281 = tpu.matmul %278, %280, %cst_100 {dimension_numbers = #tpu.dot_dimension_numbers<[1], [0], [0], [1], [0, 0, 1, 1], [], []>} : vector<8x32xbf16>, vector<32x64xbf16>, vector<8x64xf32> -> vector<8x64xf32>
    %c1_101 = arith.constant 1 : index
    %c0_102 = arith.constant 0 : index
    %c0_103 = arith.constant 0 : index
    %282 = vector.load %arg8[%c1_101, %c0_102, %c0_103] : memref<2x1x64xf32, #tpu.memory_space<vmem>>, vector<1x1x64xf32>
    %283 = vector.shape_cast %282 : vector<1x1x64xf32> to vector<1x64xf32>
    %284 = vector.broadcast %283 : vector<1x64xf32> to vector<8x64xf32>
    %285 = arith.addf %281, %284 : vector<8x64xf32>
    %cst_104 = arith.constant 0.000000e+00 : f32
    %286 = vector.broadcast %cst_104 : f32 to vector<8x64xf32>
    %287 = arith.maximumf %285, %286 : vector<8x64xf32>
    %288 = arith.truncf %287 : vector<8x64xf32> to vector<8x64xbf16>
    %c1_105 = arith.constant 1 : index
    %c0_106 = arith.constant 0 : index
    %c0_107 = arith.constant 0 : index
    %289 = vector.load %arg9[%c1_105, %c0_106, %c0_107] : memref<2x64x32xbf16, #tpu.memory_space<vmem>>, vector<1x64x32xbf16>
    %290 = vector.shape_cast %289 : vector<1x64x32xbf16> to vector<64x32xbf16>
    %cst_108 = arith.constant dense<0.000000e+00> : vector<8x32xf32>
    %291 = tpu.matmul %288, %290, %cst_108 {dimension_numbers = #tpu.dot_dimension_numbers<[1], [0], [0], [1], [0, 0, 1, 1], [], []>} : vector<8x64xbf16>, vector<64x32xbf16>, vector<8x32xf32> -> vector<8x32xf32>
    %c1_109 = arith.constant 1 : index
    %c0_110 = arith.constant 0 : index
    %c0_111 = arith.constant 0 : index
    %292 = vector.load %arg10[%c1_109, %c0_110, %c0_111] : memref<2x1x32xf32, #tpu.memory_space<vmem>>, vector<1x1x32xf32>
    %293 = vector.shape_cast %292 : vector<1x1x32xf32> to vector<1x32xf32>
    %294 = vector.broadcast %293 : vector<1x32xf32> to vector<8x32xf32>
    %295 = arith.addf %291, %294 : vector<8x32xf32>
    %296 = arith.addf %277, %295 : vector<8x32xf32>
    %cst_112 = arith.constant dense<0.000000e+00> : vector<8xf32>
    %297 = vector.multi_reduction <add>, %296, %cst_112 [1] : vector<8x32xf32> to vector<8xf32>
    %298 = vector.shape_cast %297 : vector<8xf32> to vector<8x1xf32>
    %cst_113 = arith.constant 3.200000e+01 : f32
    %299 = vector.broadcast %cst_113 : f32 to vector<8x1xf32>
    %300 = arith.divf %298, %299 : vector<8x1xf32>
    %301 = vector.broadcast %300 : vector<8x1xf32> to vector<8x32xf32>
    %302 = arith.subf %296, %301 : vector<8x32xf32>
    %303 = arith.mulf %302, %302 : vector<8x32xf32>
    %cst_114 = arith.constant dense<0.000000e+00> : vector<8xf32>
    %304 = vector.multi_reduction <add>, %303, %cst_114 [1] : vector<8x32xf32> to vector<8xf32>
    %305 = vector.shape_cast %304 : vector<8xf32> to vector<8x1xf32>
    %cst_115 = arith.constant 3.200000e+01 : f32
    %306 = vector.broadcast %cst_115 : f32 to vector<8x1xf32>
    %307 = arith.divf %305, %306 : vector<8x1xf32>
    %cst_116 = arith.constant 9.99999974E-6 : f32
    %308 = vector.broadcast %cst_116 : f32 to vector<8x1xf32>
    %309 = arith.addf %307, %308 : vector<8x1xf32>
    %310 = math.rsqrt %309 : vector<8x1xf32>
    %311 = vector.broadcast %310 : vector<8x1xf32> to vector<8x32xf32>
    %312 = arith.mulf %302, %311 : vector<8x32xf32>
    %c1_117 = arith.constant 1 : index
    %c0_118 = arith.constant 0 : index
    %c0_119 = arith.constant 0 : index
    %313 = vector.load %arg11[%c1_117, %c0_118, %c0_119] : memref<2x1x32xf32, #tpu.memory_space<vmem>>, vector<1x1x32xf32>
    %314 = vector.shape_cast %313 : vector<1x1x32xf32> to vector<1x32xf32>
    %315 = vector.broadcast %314 : vector<1x32xf32> to vector<8x32xf32>
    %316 = arith.mulf %312, %315 : vector<8x32xf32>
    %c1_120 = arith.constant 1 : index
    %c0_121 = arith.constant 0 : index
    %c0_122 = arith.constant 0 : index
    %317 = vector.load %arg12[%c1_120, %c0_121, %c0_122] : memref<2x1x32xf32, #tpu.memory_space<vmem>>, vector<1x1x32xf32>
    %318 = vector.shape_cast %317 : vector<1x1x32xf32> to vector<1x32xf32>
    %319 = vector.broadcast %318 : vector<1x32xf32> to vector<8x32xf32>
    %320 = arith.addf %316, %319 : vector<8x32xf32>
    %c0_123 = arith.constant 0 : index
    %c0_124 = arith.constant 0 : index
    %321 = vector.load %arg13[%c0_123, %c0_124] : memref<8x32xf32, #tpu.memory_space<vmem>>, vector<8x32xf32>
    tpu.vector_store %arg13[%c0_123, %c0_124], %320 {strides = array<i32>} : memref<8x32xf32, #tpu.memory_space<vmem>>, vector<8x32xf32>,
    return
  }
  func.func @transform_0(%arg0: i32, %arg1: memref<2xi32, #tpu.memory_space<smem>>) -> (i32, i32) {
    %c0_i32 = arith.constant 0 : i32
    %c0_i32_0 = arith.constant 0 : i32
    return %arg0, %c0_i32 : i32, i32
  }
  func.func @transform_1(%arg0: i32, %arg1: memref<2xi32, #tpu.memory_space<smem>>) -> (i32, i32, i32) {
    %c0_i32 = arith.constant 0 : i32
    %c0_i32_0 = arith.constant 0 : i32
    %c0_i32_1 = arith.constant 0 : i32
    %c0_i32_2 = arith.constant 0 : i32
    return %c0_i32, %c0_i32_0, %c0_i32_1 : i32, i32, i32
  }
  func.func @transform_2(%arg0: i32, %arg1: memref<2xi32, #tpu.memory_space<smem>>) -> (i32, i32, i32) {
    %c0_i32 = arith.constant 0 : i32
    %c0_i32_0 = arith.constant 0 : i32
    %c0_i32_1 = arith.constant 0 : i32
    %c0_i32_2 = arith.constant 0 : i32
    return %c0_i32, %c0_i32_0, %c0_i32_1 : i32, i32, i32
  }
  func.func @transform_3(%arg0: i32, %arg1: memref<2xi32, #tpu.memory_space<smem>>) -> (i32, i32, i32) {
    %c0_i32 = arith.constant 0 : i32
    %c0_i32_0 = arith.constant 0 : i32
    %c0_i32_1 = arith.constant 0 : i32
    %c0_i32_2 = arith.constant 0 : i32
    return %c0_i32, %c0_i32_0, %c0_i32_1 : i32, i32, i32
  }
  func.func @transform_4(%arg0: i32, %arg1: memref<2xi32, #tpu.memory_space<smem>>) -> (i32, i32, i32) {
    %c0_i32 = arith.constant 0 : i32
    %c0_i32_0 = arith.constant 0 : i32
    %c0_i32_1 = arith.constant 0 : i32
    %c0_i32_2 = arith.constant 0 : i32
    return %c0_i32, %c0_i32_0, %c0_i32_1 : i32, i32, i32
  }
  func.func @transform_5(%arg0: i32, %arg1: memref<2xi32, #tpu.memory_space<smem>>) -> (i32, i32, i32) {
    %c0_i32 = arith.constant 0 : i32
    %c0_i32_0 = arith.constant 0 : i32
    %c0_i32_1 = arith.constant 0 : i32
    %c0_i32_2 = arith.constant 0 : i32
    return %c0_i32, %c0_i32_0, %c0_i32_1 : i32, i32, i32
  }
  func.func @transform_6(%arg0: i32, %arg1: memref<2xi32, #tpu.memory_space<smem>>) -> (i32, i32, i32) {
    %c0_i32 = arith.constant 0 : i32
    %c0_i32_0 = arith.constant 0 : i32
    %c0_i32_1 = arith.constant 0 : i32
    %c0_i32_2 = arith.constant 0 : i32
    return %c0_i32, %c0_i32_0, %c0_i32_1 : i32, i32, i32
  }
  func.func @transform_7(%arg0: i32, %arg1: memref<2xi32, #tpu.memory_space<smem>>) -> (i32, i32, i32) {
    %c0_i32 = arith.constant 0 : i32
    %c0_i32_0 = arith.constant 0 : i32
    %c0_i32_1 = arith.constant 0 : i32
    %c0_i32_2 = arith.constant 0 : i32
    return %c0_i32, %c0_i32_0, %c0_i32_1 : i32, i32, i32
  }
  func.func @transform_8(%arg0: i32, %arg1: memref<2xi32, #tpu.memory_space<smem>>) -> (i32, i32, i32) {
    %c0_i32 = arith.constant 0 : i32
    %c0_i32_0 = arith.constant 0 : i32
    %c0_i32_1 = arith.constant 0 : i32
    %c0_i32_2 = arith.constant 0 : i32
    return %c0_i32, %c0_i32_0, %c0_i32_1 : i32, i32, i32
  }
  func.func @transform_9(%arg0: i32, %arg1: memref<2xi32, #tpu.memory_space<smem>>) -> (i32, i32, i32) {
    %c0_i32 = arith.constant 0 : i32
    %c0_i32_0 = arith.constant 0 : i32
    %c0_i32_1 = arith.constant 0 : i32
    %c0_i32_2 = arith.constant 0 : i32
    return %c0_i32, %c0_i32_0, %c0_i32_1 : i32, i32, i32
  }
  func.func @transform_10(%arg0: i32, %arg1: memref<2xi32, #tpu.memory_space<smem>>) -> (i32, i32, i32) {
    %c0_i32 = arith.constant 0 : i32
    %c0_i32_0 = arith.constant 0 : i32
    %c0_i32_1 = arith.constant 0 : i32
    %c0_i32_2 = arith.constant 0 : i32
    return %c0_i32, %c0_i32_0, %c0_i32_1 : i32, i32, i32
  }
  func.func @transform_11(%arg0: i32, %arg1: memref<2xi32, #tpu.memory_space<smem>>) -> (i32, i32) {
    %c0_i32 = arith.constant 0 : i32
    %c0_i32_0 = arith.constant 0 : i32
    return %arg0, %c0_i32 : i32, i32
  }
}

</mosaic_0001>

<llo_original>
// kernel: transformer_encoder_forward.1
$region0: #{transformer_encoder_forward.1}
  #allocation0 [shape = 'u32[]', space=smem, size = 0x4, offset = 0x4, fixed_abs, tag = 'smem constant byte address 0x4 - core index']
  #allocation1 [shape = 'u32[144,128]{1,0:T(1,128)}', space=vmem, size = 0x12000, scoped, tag = 'internal scratch']
  #allocation2 [shape = 's32[1]{0}', space=sflag, size = 0x4, scoped, tag = 'scoped memory for transformer_encoder_forward.1']
  #allocation3 [shape = 'u8[512]{0}', space=smem, size = 0x200, scoped, tag = 'prefetched SMEM operand 0']
  %s0 = inlined_call_operand.vmem [shape: s32[2], index: 0, kind: input, shape index: {}]
  %s1 = inlined_call_operand.vmem [shape: f32[16,32], index: 1, kind: input, shape index: {}]
  %s2 = inlined_call_operand.vmem [shape: bf16[2,32,96], index: 2, kind: input, shape index: {}]
  %s3 = inlined_call_operand.vmem [shape: bf16[2,32,32], index: 3, kind: input, shape index: {}]
  %s4 = inlined_call_operand.vmem [shape: f32[2,1,32], index: 4, kind: input, shape index: {}]
  %s5 = inlined_call_operand.vmem [shape: f32[2,1,32], index: 5, kind: input, shape index: {}]
  %s6 = inlined_call_operand.vmem [shape: bf16[2,32,64], index: 6, kind: input, shape index: {}]
  %s7 = inlined_call_operand.vmem [shape: f32[2,1,64], index: 7, kind: input, shape index: {}]
  %s8 = inlined_call_operand.vmem [shape: bf16[2,64,32], index: 8, kind: input, shape index: {}]
  %s9 = inlined_call_operand.vmem [shape: f32[2,1,32], index: 9, kind: input, shape index: {}]
  %s10 = inlined_call_operand.vmem [shape: f32[2,1,32], index: 10, kind: input, shape index: {}]
  %s11 = inlined_call_operand.vmem [shape: f32[2,1,32], index: 11, kind: input, shape index: {}]
  %s12 = inlined_call_operand.hbm [shape: f32[16,32], index: 12, kind: output, shape index: {}]
  %s13 = sld [smem:[#allocation0]]
  $region77: #{transformer_encoder_forward.1} parent=0
    _
  %s15 = ssub.s32 1, %s13
  %s16 = scalar_select 0, %s15, %s13
  %s17 = sshll.u32 %s0, 4
  %s18 = int_to_ptr.vmem [resolvable:$true] %s17
  %20 = dma.vmem_to_smem %s18, 16, [#allocation3], [#allocation2]
  %21 = dma.done [#allocation2], 16
  %22 = sfence
  $region1: #{transformer_encoder_forward.1} parent=0
    #allocation4 [shape = 'u8[8192]{0}', space=vmem, size = 0x2000, scoped, tag = 'output window, operand 0']
    #allocation5 [shape = 's32[2]{0}', space=sflag, size = 0x8, scoped, tag = 'scoped memory for transformer_encoder_forward.1']
    %23 = vsyncpa [#allocation5], 0
    %s24 = scalar_lea.sflag [#allocation5], 1
    %25 = vsyncpa %s24, 0
    loop: start=0, step=1, limit=4
    $region2: #{transformer_encoder_forward.1} parent=1 // loop_pre_header
      _
    $region3: #{transformer_encoder_forward.1} parent=1 // loop_header
      %s27 = sphi 0, %s31
      %p28 = scmp.ge.s32.totalorder %s27, 4
      %s37 = sphi 0, %s39
      %s40 = sphi 0, %s37
      %s41 = sphi 0, %s40
      %s57 = sphi 0, %s41
      %s61 = sphi 0, %s61
      %s63 = sphi 0, %s61
      %s64 = sphi 0, %s63
      %s78 = sphi 0, %s64
      %s82 = sphi 0, %s82
      %s84 = sphi 0, %s82
      %s85 = sphi 0, %s84
      %s99 = sphi 0, %s85
      %s103 = sphi 0, %s103
      %s105 = sphi 0, %s103
      %s106 = sphi 0, %s105
      %s120 = sphi 0, %s106
      %s124 = sphi 0, %s124
      %s126 = sphi 0, %s124
      %s127 = sphi 0, %s126
      %s141 = sphi 0, %s127
      %s145 = sphi 0, %s145
      %s147 = sphi 0, %s145
      %s148 = sphi 0, %s147
      %s162 = sphi 0, %s148
      %s166 = sphi 0, %s166
      %s168 = sphi 0, %s166
      %s169 = sphi 0, %s168
      %s183 = sphi 0, %s169
      %s187 = sphi 0, %s187
      %s189 = sphi 0, %s187
      %s190 = sphi 0, %s189
      %s204 = sphi 0, %s190
      %s208 = sphi 0, %s208
      %s210 = sphi 0, %s208
      %s211 = sphi 0, %s210
      %s225 = sphi 0, %s211
      %s229 = sphi 0, %s229
      %s231 = sphi 0, %s229
      %s232 = sphi 0, %s231
      %s246 = sphi 0, %s232
      %s250 = sphi 0, %s250
      %s252 = sphi 0, %s250
      %s253 = sphi 0, %s252
      %s267 = sphi 0, %s253
      %s273 = sphi 0, %s275
      %s276 = sphi 0, %s273
      %s277 = sphi 0, %s276
      %s293 = sphi 0, %s277
    $region4: #{transformer_encoder_forward.1} parent=1 // loop_header_branch
      %30 = sbr.rel (%p28) target = $region8
    $region5: #{transformer_encoder_forward.1} parent=1 // loop_body
      %s32 = ssub.s32 %s27, 1
      %s33 = ssub.s32 %s27, 2
      %s34 = sadd.s32 %s27, 1
      %s35 = ssub.s32 %s27, %s34
      %p36 = scmp.eq.s32.totalorder %s35, 0
      %s38 = sadd.s32 %s37, 1
      %s39 = scalar_select %p36, %s37, %s38
      %p42 = pneg %p36
      %p43 = scmp.eq.s32.totalorder %s27, 1
      %p44 = por %p42, %p43
      %p45 = scmp.ne.s32.totalorder %s37, %s40
      %p46 = scmp.eq.s32.totalorder %s27, 0
      %p47 = por %p45, %p46
      %p48 = scmp.ne.s32.totalorder %s37, %s40
      %p49 = scmp.eq.s32.totalorder %s32, 1
      %p50 = por %p48, %p49
      %p51 = scmp.ne.s32.totalorder %s40, %s41
      %p52 = scmp.eq.s32.totalorder %s32, 0
      %p53 = por %p51, %p52
      %p54 = scmp.ne.s32.totalorder %s40, %s41
      %p55 = scmp.eq.s32.totalorder %s33, 1
      %p56 = por %p54, %p55
      %p58 = scmp.ne.s32.totalorder %s41, %s57
      %p59 = scmp.eq.s32.totalorder %s33, 0
      %p60 = por %p58, %p59
      %s62 = sadd.s32 %s61, 1
      %p65 = scmp.eq.s32.totalorder %s27, 1
      %p66 = scmp.ne.s32.totalorder %s61, %s63
      %p67 = scmp.eq.s32.totalorder %s27, 0
      %p68 = por %p66, %p67
      %p69 = scmp.ne.s32.totalorder %s61, %s63
      %p70 = scmp.eq.s32.totalorder %s32, 1
      %p71 = por %p69, %p70
      %p72 = scmp.ne.s32.totalorder %s63, %s64
      %p73 = scmp.eq.s32.totalorder %s32, 0
      %p74 = por %p72, %p73
      %p75 = scmp.ne.s32.totalorder %s63, %s64
      %p76 = scmp.eq.s32.totalorder %s33, 1
      %p77 = por %p75, %p76
      %p79 = scmp.ne.s32.totalorder %s64, %s78
      %p80 = scmp.eq.s32.totalorder %s33, 0
      %p81 = por %p79, %p80
      %s83 = sadd.s32 %s82, 1
      %p86 = scmp.eq.s32.totalorder %s27, 1
      %p87 = scmp.ne.s32.totalorder %s82, %s84
      %p88 = scmp.eq.s32.totalorder %s27, 0
      %p89 = por %p87, %p88
      %p90 = scmp.ne.s32.totalorder %s82, %s84
      %p91 = scmp.eq.s32.totalorder %s32, 1
      %p92 = por %p90, %p91
      %p93 = scmp.ne.s32.totalorder %s84, %s85
      %p94 = scmp.eq.s32.totalorder %s32, 0
      %p95 = por %p93, %p94
      %p96 = scmp.ne.s32.totalorder %s84, %s85
      %p97 = scmp.eq.s32.totalorder %s33, 1
      %p98 = por %p96, %p97
      %p100 = scmp.ne.s32.totalorder %s85, %s99
      %p101 = scmp.eq.s32.totalorder %s33, 0
      %p102 = por %p100, %p101
      %s104 = sadd.s32 %s103, 1
      %p107 = scmp.eq.s32.totalorder %s27, 1
      %p108 = scmp.ne.s32.totalorder %s103, %s105
      %p109 = scmp.eq.s32.totalorder %s27, 0
      %p110 = por %p108, %p109
      %p111 = scmp.ne.s32.totalorder %s103, %s105
      %p112 = scmp.eq.s32.totalorder %s32, 1
      %p113 = por %p111, %p112
      %p114 = scmp.ne.s32.totalorder %s105, %s106
      %p115 = scmp.eq.s32.totalorder %s32, 0
      %p116 = por %p114, %p115
      %p117 = scmp.ne.s32.totalorder %s105, %s106
      %p118 = scmp.eq.s32.totalorder %s33, 1
      %p119 = por %p117, %p118
      %p121 = scmp.ne.s32.totalorder %s106, %s120
      %p122 = scmp.eq.s32.totalorder %s33, 0
      %p123 = por %p121, %p122
      %s125 = sadd.s32 %s124, 1
      %p128 = scmp.eq.s32.totalorder %s27, 1
      %p129 = scmp.ne.s32.totalorder %s124, %s126
      %p130 = scmp.eq.s32.totalorder %s27, 0
      %p131 = por %p129, %p130
      %p132 = scmp.ne.s32.totalorder %s124, %s126
      %p133 = scmp.eq.s32.totalorder %s32, 1
      %p134 = por %p132, %p133
      %p135 = scmp.ne.s32.totalorder %s126, %s127
      %p136 = scmp.eq.s32.totalorder %s32, 0
      %p137 = por %p135, %p136
      %p138 = scmp.ne.s32.totalorder %s126, %s127
      %p139 = scmp.eq.s32.totalorder %s33, 1
      %p140 = por %p138, %p139
      %p142 = scmp.ne.s32.totalorder %s127, %s141
      %p143 = scmp.eq.s32.totalorder %s33, 0
      %p144 = por %p142, %p143
      %s146 = sadd.s32 %s145, 1
      %p149 = scmp.eq.s32.totalorder %s27, 1
      %p150 = scmp.ne.s32.totalorder %s145, %s147
      %p151 = scmp.eq.s32.totalorder %s27, 0
      %p152 = por %p150, %p151
      %p153 = scmp.ne.s32.totalorder %s145, %s147
      %p154 = scmp.eq.s32.totalorder %s32, 1
      %p155 = por %p153, %p154
      %p156 = scmp.ne.s32.totalorder %s147, %s148
      %p157 = scmp.eq.s32.totalorder %s32, 0
      %p158 = por %p156, %p157
      %p159 = scmp.ne.s32.totalorder %s147, %s148
      %p160 = scmp.eq.s32.totalorder %s33, 1
      %p161 = por %p159, %p160
      %p163 = scmp.ne.s32.totalorder %s148, %s162
      %p164 = scmp.eq.s32.totalorder %s33, 0
      %p165 = por %p163, %p164
      %s167 = sadd.s32 %s166, 1
      %p170 = scmp.eq.s32.totalorder %s27, 1
      %p171 = scmp.ne.s32.totalorder %s166, %s168
      %p172 = scmp.eq.s32.totalorder %s27, 0
      %p173 = por %p171, %p172
      %p174 = scmp.ne.s32.totalorder %s166, %s168
      %p175 = scmp.eq.s32.totalorder %s32, 1
      %p176 = por %p174, %p175
      %p177 = scmp.ne.s32.totalorder %s168, %s169
      %p178 = scmp.eq.s32.totalorder %s32, 0
      %p179 = por %p177, %p178
      %p180 = scmp.ne.s32.totalorder %s168, %s169
      %p181 = scmp.eq.s32.totalorder %s33, 1
      %p182 = por %p180, %p181
      %p184 = scmp.ne.s32.totalorder %s169, %s183
      %p185 = scmp.eq.s32.totalorder %s33, 0
      %p186 = por %p184, %p185
      %s188 = sadd.s32 %s187, 1
      %p191 = scmp.eq.s32.totalorder %s27, 1
      %p192 = scmp.ne.s32.totalorder %s187, %s189
      %p193 = scmp.eq.s32.totalorder %s27, 0
      %p194 = por %p192, %p193
      %p195 = scmp.ne.s32.totalorder %s187, %s189
      %p196 = scmp.eq.s32.totalorder %s32, 1
      %p197 = por %p195, %p196
      %p198 = scmp.ne.s32.totalorder %s189, %s190
      %p199 = scmp.eq.s32.totalorder %s32, 0
      %p200 = por %p198, %p199
      %p201 = scmp.ne.s32.totalorder %s189, %s190
      %p202 = scmp.eq.s32.totalorder %s33, 1
      %p203 = por %p201, %p202
      %p205 = scmp.ne.s32.totalorder %s190, %s204
      %p206 = scmp.eq.s32.totalorder %s33, 0
      %p207 = por %p205, %p206
      %s209 = sadd.s32 %s208, 1
      %p212 = scmp.eq.s32.totalorder %s27, 1
      %p213 = scmp.ne.s32.totalorder %s208, %s210
      %p214 = scmp.eq.s32.totalorder %s27, 0
      %p215 = por %p213, %p214
      %p216 = scmp.ne.s32.totalorder %s208, %s210
      %p217 = scmp.eq.s32.totalorder %s32, 1
      %p218 = por %p216, %p217
      %p219 = scmp.ne.s32.totalorder %s210, %s211
      %p220 = scmp.eq.s32.totalorder %s32, 0
      %p221 = por %p219, %p220
      %p222 = scmp.ne.s32.totalorder %s210, %s211
      %p223 = scmp.eq.s32.totalorder %s33, 1
      %p224 = por %p222, %p223
      %p226 = scmp.ne.s32.totalorder %s211, %s225
      %p227 = scmp.eq.s32.totalorder %s33, 0
      %p228 = por %p226, %p227
      %s230 = sadd.s32 %s229, 1
      %p233 = scmp.eq.s32.totalorder %s27, 1
      %p234 = scmp.ne.s32.totalorder %s229, %s231
      %p235 = scmp.eq.s32.totalorder %s27, 0
      %p236 = por %p234, %p235
      %p237 = scmp.ne.s32.totalorder %s229, %s231
      %p238 = scmp.eq.s32.totalorder %s32, 1
      %p239 = por %p237, %p238
      %p240 = scmp.ne.s32.totalorder %s231, %s232
      %p241 = scmp.eq.s32.totalorder %s32, 0
      %p242 = por %p240, %p241
      %p243 = scmp.ne.s32.totalorder %s231, %s232
      %p244 = scmp.eq.s32.totalorder %s33, 1
      %p245 = por %p243, %p244
      %p247 = scmp.ne.s32.totalorder %s232, %s246
      %p248 = scmp.eq.s32.totalorder %s33, 0
      %p249 = por %p247, %p248
      %s251 = sadd.s32 %s250, 1
      %p254 = scmp.eq.s32.totalorder %s27, 1
      %p255 = scmp.ne.s32.totalorder %s250, %s252
      %p256 = scmp.eq.s32.totalorder %s27, 0
      %p257 = por %p255, %p256
      %p258 = scmp.ne.s32.totalorder %s250, %s252
      %p259 = scmp.eq.s32.totalorder %s32, 1
      %p260 = por %p258, %p259
      %p261 = scmp.ne.s32.totalorder %s252, %s253
      %p262 = scmp.eq.s32.totalorder %s32, 0
      %p263 = por %p261, %p262
      %p264 = scmp.ne.s32.totalorder %s252, %s253
      %p265 = scmp.eq.s32.totalorder %s33, 1
      %p266 = por %p264, %p265
      %p268 = scmp.ne.s32.totalorder %s253, %s267
      %p269 = scmp.eq.s32.totalorder %s33, 0
      %p270 = por %p268, %p269
      %s271 = ssub.s32 %s27, %s34
      %p272 = scmp.eq.s32.totalorder %s271, 0
      %s274 = sadd.s32 %s273, 1
      %s275 = scalar_select %p272, %s273, %s274
      %p278 = pneg %p272
      %p279 = scmp.eq.s32.totalorder %s27, 1
      %p280 = por %p278, %p279
      %p281 = scmp.ne.s32.totalorder %s273, %s276
      %p282 = scmp.eq.s32.totalorder %s27, 0
      %p283 = por %p281, %p282
      %p284 = scmp.ne.s32.totalorder %s273, %s276
      %p285 = scmp.eq.s32.totalorder %s32, 1
      %p286 = por %p284, %p285
      %p287 = scmp.ne.s32.totalorder %s276, %s277
      %p288 = scmp.eq.s32.totalorder %s32, 0
      %p289 = por %p287, %p288
      %p290 = scmp.ne.s32.totalorder %s276, %s277
      %p291 = scmp.eq.s32.totalorder %s33, 1
      %p292 = por %p290, %p291
      %p294 = scmp.ne.s32.totalorder %s277, %s293
      %p295 = scmp.eq.s32.totalorder %s33, 0
      %p296 = por %p294, %p295
      %p297 = scmp.le.s32.totalorder 1, %s27
      %p298 = scmp.lt.s32.totalorder %s27, 3
      %p299 = pnand %p297, %p298
      %p300 = pneg %p299
      // Predicated region
      $region9: #{transformer_encoder_forward.1} parent=5 // pred_check
        _
      $region10: #{transformer_encoder_forward.1} parent=5 // pred_check_branch
        %302 = sbr.rel (%p299) target = $region12
      $region11: #{transformer_encoder_forward.1} parent=5 // pred_region
        %s303 = ssub.s32 %s27, 1
        // Predicated region
        $region13: #{transformer_encoder_forward.1} parent=11 // pred_check
          %p304 = pneg %p74
        $region14: #{transformer_encoder_forward.1} parent=11 // pred_check_branch
          %306 = sbr.rel (%p304) target = $region16
        $region15: #{transformer_encoder_forward.1} parent=11 // pred_region
          _
        $region16: #{transformer_encoder_forward.1} parent=11 // pred_fallthru
          _
        // Predicated region
        $region17: #{transformer_encoder_forward.1} parent=11 // pred_check
          %p307 = pneg %p95
        $region18: #{transformer_encoder_forward.1} parent=11 // pred_check_branch
          %309 = sbr.rel (%p307) target = $region20
        $region19: #{transformer_encoder_forward.1} parent=11 // pred_region
          _
        $region20: #{transformer_encoder_forward.1} parent=11 // pred_fallthru
          _
        // Predicated region
        $region21: #{transformer_encoder_forward.1} parent=11 // pred_check
          %p310 = pneg %p116
        $region22: #{transformer_encoder_forward.1} parent=11 // pred_check_branch
          %312 = sbr.rel (%p310) target = $region24
        $region23: #{transformer_encoder_forward.1} parent=11 // pred_region
          _
        $region24: #{transformer_encoder_forward.1} parent=11 // pred_fallthru
          _
        // Predicated region
        $region25: #{transformer_encoder_forward.1} parent=11 // pred_check
          %p313 = pneg %p137
        $region26: #{transformer_encoder_forward.1} parent=11 // pred_check_branch
          %315 = sbr.rel (%p313) target = $region28
        $region27: #{transformer_encoder_forward.1} parent=11 // pred_region
          _
        $region28: #{transformer_encoder_forward.1} parent=11 // pred_fallthru
          _
        // Predicated region
        $region29: #{transformer_encoder_forward.1} parent=11 // pred_check
          %p316 = pneg %p158
        $region30: #{transformer_encoder_forward.1} parent=11 // pred_check_branch
          %318 = sbr.rel (%p316) target = $region32
        $region31: #{transformer_encoder_forward.1} parent=11 // pred_region
          _
        $region32: #{transformer_encoder_forward.1} parent=11 // pred_fallthru
          _
        // Predicated region
        $region33: #{transformer_encoder_forward.1} parent=11 // pred_check
          %p319 = pneg %p179
        $region34: #{transformer_encoder_forward.1} parent=11 // pred_check_branch
          %321 = sbr.rel (%p319) target = $region36
        $region35: #{transformer_encoder_forward.1} parent=11 // pred_region
          _
        $region36: #{transformer_encoder_forward.1} parent=11 // pred_fallthru
          _
        // Predicated region
        $region37: #{transformer_encoder_forward.1} parent=11 // pred_check
          %p322 = pneg %p200
        $region38: #{transformer_encoder_forward.1} parent=11 // pred_check_branch
          %324 = sbr.rel (%p322) target = $region40
        $region39: #{transformer_encoder_forward.1} parent=11 // pred_region
          _
        $region40: #{transformer_encoder_forward.1} parent=11 // pred_fallthru
          _
        // Predicated region
        $region41: #{transformer_encoder_forward.1} parent=11 // pred_check
          %p325 = pneg %p221
        $region42: #{transformer_encoder_forward.1} parent=11 // pred_check_branch
          %327 = sbr.rel (%p325) target = $region44
        $region43: #{transformer_encoder_forward.1} parent=11 // pred_region
          _
        $region44: #{transformer_encoder_forward.1} parent=11 // pred_fallthru
          _
        // Predicated region
        $region45: #{transformer_encoder_forward.1} parent=11 // pred_check
          %p328 = pneg %p242
        $region46: #{transformer_encoder_forward.1} parent=11 // pred_check_branch
          %330 = sbr.rel (%p328) target = $region48
        $region47: #{transformer_encoder_forward.1} parent=11 // pred_region
          _
        $region48: #{transformer_encoder_forward.1} parent=11 // pred_fallthru
          _
        // Predicated region
        $region49: #{transformer_encoder_forward.1} parent=11 // pred_check
          %p331 = pneg %p263
        $region50: #{transformer_encoder_forward.1} parent=11 // pred_check_branch
          %333 = sbr.rel (%p331) target = $region52
        $region51: #{transformer_encoder_forward.1} parent=11 // pred_region
          _
        $region52: #{transformer_encoder_forward.1} parent=11 // pred_fallthru
          _
      $region12: #{transformer_encoder_forward.1} parent=5 // pred_fallthru
        _
      %p334 = scmp.lt.s32.totalorder %s27, 2
      // Predicated region
      $region53: #{transformer_encoder_forward.1} parent=5 // pred_check
        %p335 = pneg %p334
      $region54: #{transformer_encoder_forward.1} parent=5 // pred_check_branch
        %337 = sbr.rel (%p335) target = $region56
      $region55: #{transformer_encoder_forward.1} parent=5 // pred_region
        // Predicated region
        $region57: #{transformer_encoder_forward.1} parent=55 // pred_check
          %p338 = pneg %p47
        $region58: #{transformer_encoder_forward.1} parent=55 // pred_check_branch
          %340 = sbr.rel (%p338) target = $region60
        $region59: #{transformer_encoder_forward.1} parent=55 // pred_region
          %p341 = scmp.lt.s32.totalorder %s27, 1
          %s342 = scalar_select %p341, %s27, 1
          %s343 = smul.addr %s342, 8
          %s344 = scalar_lea.vmem %s1, %s343
        $region60: #{transformer_encoder_forward.1} parent=55 // pred_fallthru
          _
      $region56: #{transformer_encoder_forward.1} parent=5 // pred_fallthru
        _
      %p345 = scmp.le.s32.totalorder 1, %s27
      %p346 = scmp.lt.s32.totalorder %s27, 3
      %p347 = pnand %p345, %p346
      %p348 = pneg %p347
      // Predicated region
      $region61: #{transformer_encoder_forward.1} parent=5 // pred_check
        _
      $region62: #{transformer_encoder_forward.1} parent=5 // pred_check_branch
        %350 = sbr.rel (%p347) target = $region64
      $region63: #{transformer_encoder_forward.1} parent=5 // pred_region
        %s351 = ssub.s32 %s27, 1
        %p352 = scmp.lt.s32.totalorder %s32, 1
        %s353 = scalar_select %p352, %s32, 1
        %s354 = smul.addr %s353, 8
        %s355 = scalar_lea.vmem %s1, %s354
        %p356 = pneg %p53
        %p357 = pneg %p50
        %p358 = pneg %p74
        %p359 = pneg %p71
        %p360 = pneg %p95
        %p361 = pneg %p92
        %p362 = pneg %p116
        %p363 = pneg %p113
        %p364 = pneg %p137
        %p365 = pneg %p134
        %p366 = pneg %p158
        %p367 = pneg %p155
        %p368 = pneg %p179
        %p369 = pneg %p176
        %p370 = pneg %p200
        %p371 = pneg %p197
        %p372 = pneg %p221
        %p373 = pneg %p218
        %p374 = pneg %p242
        %p375 = pneg %p239
        %p376 = pneg %p263
        %p377 = pneg %p260
        %p378 = pneg %p289
        %p379 = pneg %p286
        %s380 = sand.u32 %s276, 1
        %s381 = scalar_lea.sflag [#allocation5], %s380
        %s382 = sand.u32 %s276, 1
        %s383 = smul.addr %s382, 8
        %s384 = scalar_lea.vmem [#allocation4], %s383
        %p385 = scmp.lt.s32.totalorder %s32, 1
        %s386 = scalar_select %p385, %s32, 1
        %s387 = smul.addr %s386, 8
        %s388 = scalar_lea.vmem %s1, %s387
        %s390 = sld [smem:[#allocation3 + %s32]]
        %v391 = vlaneseq
        %v392 = vand.u32 %v391, 127
        %v393 = vstv %s390
        %vm394 = vcmp.lt.s32.totalorder %v392, %v393
        %v395 = vsel %vm394, 0.0, -1000000.0
        %v396 = vld [vmem:[%s388] sm:$0xff]
        %v397 = vpack.c.bf16 %v396, %v396
        %v398 = vld [vmem:[%s2] sm:$0xf]
        %v399 = vld [vmem:[%s2 + $0x4] sm:$0xf]
        %v400 = vld [vmem:[%s2 + $0x8] sm:$0xf]
        %v401 = vld [vmem:[%s2 + $0xc] sm:$0xf]
        %v406 = vunpack.c.l.b16 %v398
        %v407 = vunpack.c.l.b16 %v399
        %v408 = vunpack.c.l.b16 %v400
        %v409 = vunpack.c.l.b16 %v401
        %v410 = vpack.c.b16 %v407, %v406
        %v411 = vpack.c.b16 %v409, %v408
        %vm414 = vcmask 261120
        %v416 = vsel %vm414, %v397, 0
        %418 = vmatprep.subr.bf16.mxu0 0
        %419 = vmatpush1.bf16.msra.mxu0 %v410
        %420 = vmatprep.subr.bf16.mxu0 0
        %421 = vmatpush1.bf16.msra.mxu0 %v411
        %422 = vmatprep.subr.bf16.mxu0 0
        %423 = vmatpush1.bf16.msra.mxu0 0
        %424 = vmatprep.subr.bf16.mxu0 0
        %425 = vmatpush1.bf16.msra.mxu0 0
        %426 = vmatprep.subr.bf16.mxu0 0
        %427 = vmatpush1.bf16.msra.mxu0 0
        %428 = vmatprep.subr.bf16.mxu0 0
        %429 = vmatpush1.bf16.msra.mxu0 0
        %430 = vmatprep.subr.bf16.mxu0 0
        %431 = vmatpush1.bf16.msra.mxu0 0
        %432 = vmatprep.subr.bf16.mxu0 0
        %433 = vmatpush1.bf16.msra.mxu0 0
        %434 = vmatprep.subr.bf16.mxu0 0
        %435 = vmatpush1.bf16.msra.mxu0 0
        %436 = vmatprep.subr.bf16.mxu0 0
        %437 = vmatpush1.bf16.msra.mxu0 0
        %438 = vmatprep.subr.bf16.mxu0 0
        %439 = vmatpush1.bf16.msra.mxu0 0
        %440 = vmatprep.subr.bf16.mxu0 0
        %441 = vmatpush1.bf16.msra.mxu0 0
        %442 = vmatprep.subr.bf16.mxu0 0
        %443 = vmatpush1.bf16.msra.mxu0 0
        %444 = vmatprep.subr.bf16.mxu0 0
        %445 = vmatpush1.bf16.msra.mxu0 0
        %446 = vmatprep.subr.bf16.mxu0 0
        %447 = vmatpush1.bf16.msra.mxu0 0
        %448 = vmatprep.subr.bf16.mxu0 0
        %449 = vmatpush1.bf16.msra.mxu0 0
        %450 = vmatprep.mubr.bf16.mxu0 0
        %451 = vmatmul.mubr.bf16.gmra.mrb[0].mxu0 %v416
        %v452 = vpop.f32.mrb[0].mxu0
        %v453 = vadd.f32 0.0, %v452
        %v454 = vpop.f32.mrb[0].mxu0
        %v455 = vpop.f32.mrb[0].mxu0
        %v456 = vpop.f32.mrb[0].mxu0
        %457 = vdwg.mxu0
        %v458 = vpack.c.bf16 %v453, %v453
        %460 = vrot.lane.b32.xlu0 %v458, 96
        %v461 = vpop.permute.xlu0 %460
        %vm462 = vcmask 64512
        %v464 = vsel %vm462, %v458, 0
        %v467 = vsel %vm462, %v461, 0
        %469 = vmatprep.subr.bf16.mxu0 0
        %470 = vmatpush1.bf16.xpose.msra.mxu0 %v467
        %471 = vmatprep.subr.bf16.mxu0 0
        %472 = vmatpush1.bf16.xpose.msra.mxu0 0
        %473 = vmatprep.subr.bf16.mxu0 0
        %474 = vmatpush1.bf16.xpose.msra.mxu0 0
        %475 = vmatprep.subr.bf16.mxu0 0
        %476 = vmatpush1.bf16.xpose.msra.mxu0 0
        %477 = vmatprep.subr.bf16.mxu0 0
        %478 = vmatpush1.bf16.xpose.msra.mxu0 0
        %479 = vmatprep.subr.bf16.mxu0 0
        %480 = vmatpush1.bf16.xpose.msra.mxu0 0
        %481 = vmatprep.subr.bf16.mxu0 0
        %482 = vmatpush1.bf16.xpose.msra.mxu0 0
        %483 = vmatprep.subr.bf16.mxu0 0
        %484 = vmatpush1.bf16.xpose.msra.mxu0 0
        %485 = vmatprep.subr.bf16.mxu0 0
        %486 = vmatpush1.bf16.xpose.msra.mxu0 0
        %487 = vmatprep.subr.bf16.mxu0 0
        %488 = vmatpush1.bf16.xpose.msra.mxu0 0
        %489 = vmatprep.subr.bf16.mxu0 0
        %490 = vmatpush1.bf16.xpose.msra.mxu0 0
        %491 = vmatprep.subr.bf16.mxu0 0
        %492 = vmatpush1.bf16.xpose.msra.mxu0 0
        %493 = vmatprep.subr.bf16.mxu0 0
        %494 = vmatpush1.bf16.xpose.msra.mxu0 0
        %495 = vmatprep.subr.bf16.mxu0 0
        %496 = vmatpush1.bf16.xpose.msra.mxu0 0
        %497 = vmatprep.subr.bf16.mxu0 0
        %498 = vmatpush1.bf16.xpose.msra.mxu0 0
        %499 = vmatprep.subr.bf16.mxu0 0
        %500 = vmatpush1.bf16.xpose.msra.mxu0 0
        %501 = vmatprep.mubr.bf16.mxu0 0
        %502 = vmatmul.mubr.bf16.gmra.mrb[0].mxu0 %v464
        %v503 = vpop.f32.mrb[0].mxu0
        %v504 = vadd.f32 %v395, %v503
        %v505 = vpop.f32.mrb[0].mxu0
        %v506 = vpop.f32.mrb[0].mxu0
        %v507 = vpop.f32.mrb[0].mxu0
        %508 = vdwg.mxu0
        %v509 = vsel %vm462, %v504, -inf
        %510 = vmax.xlane.f32.xlu0 %v509
        %v511 = vpop.xlane.xlu0 %510
        %v512 = vsub.f32 %v504, %v511
        %v513 = vmul.f32 %v512, 1.442695
        %v514 = vpow.pop %v513
        %v515 = vsel %vm462, %v514, 0.0
        %516 = vadd.xlane.f32.xlu0 %v515
        %v517 = vpop.xlane.xlu0 %516
        %v518 = vrcp.pop %v517
        %v519 = vmul.f32 %v514, %v518
        %v520 = vpack.c.bf16 %v519, %v519
        %521 = vrot.lane.b32.xlu0 %v458, 64
        %v522 = vpop.permute.xlu0 %521
        %v524 = vsel %vm462, %v520, 0
        %vm526 = vcmask 1043456
        %v528 = vsel %vm526, %v522, 0
        %530 = vmatprep.subr.bf16.mxu0 0
        %531 = vmatpush1.bf16.msra.mxu0 %v528
        %532 = vmatprep.subr.bf16.mxu0 0
        %533 = vmatpush1.bf16.msra.mxu0 0
        %534 = vmatprep.subr.bf16.mxu0 0
        %535 = vmatpush1.bf16.msra.mxu0 0
        %536 = vmatprep.subr.bf16.mxu0 0
        %537 = vmatpush1.bf16.msra.mxu0 0
        %538 = vmatprep.subr.bf16.mxu0 0
        %539 = vmatpush1.bf16.msra.mxu0 0
        %540 = vmatprep.subr.bf16.mxu0 0
        %541 = vmatpush1.bf16.msra.mxu0 0
        %542 = vmatprep.subr.bf16.mxu0 0
        %543 = vmatpush1.bf16.msra.mxu0 0
        %544 = vmatprep.subr.bf16.mxu0 0
        %545 = vmatpush1.bf16.msra.mxu0 0
        %546 = vmatprep.subr.bf16.mxu0 0
        %547 = vmatpush1.bf16.msra.mxu0 0
        %548 = vmatprep.subr.bf16.mxu0 0
        %549 = vmatpush1.bf16.msra.mxu0 0
        %550 = vmatprep.subr.bf16.mxu0 0
        %551 = vmatpush1.bf16.msra.mxu0 0
        %552 = vmatprep.subr.bf16.mxu0 0
        %553 = vmatpush1.bf16.msra.mxu0 0
        %554 = vmatprep.subr.bf16.mxu0 0
        %555 = vmatpush1.bf16.msra.mxu0 0
        %556 = vmatprep.subr.bf16.mxu0 0
        %557 = vmatpush1.bf16.msra.mxu0 0
        %558 = vmatprep.subr.bf16.mxu0 0
        %559 = vmatpush1.bf16.msra.mxu0 0
        %560 = vmatprep.subr.bf16.mxu0 0
        %561 = vmatpush1.bf16.msra.mxu0 0
        %562 = vmatprep.mubr.bf16.mxu0 0
        %563 = vmatmul.mubr.bf16.gmra.mrb[0].mxu0 %v524
        %v564 = vpop.f32.mrb[0].mxu0
        %v565 = vadd.f32 0.0, %v564
        %v566 = vpop.f32.mrb[0].mxu0
        %v567 = vpop.f32.mrb[0].mxu0
        %v568 = vpop.f32.mrb[0].mxu0
        %569 = vdwg.mxu0
        %570 = vrot.lane.b32.xlu0 %v458, 120
        %v571 = vpop.permute.xlu0 %570
        %572 = vrot.lane.b32.xlu0 %v458, 88
        %v573 = vpop.permute.xlu0 %572
        %v575 = vsel %vm462, %v571, 0
        %v578 = vsel %vm462, %v573, 0
        %580 = vmatprep.subr.bf16.mxu0 0
        %581 = vmatpush1.bf16.xpose.msra.mxu0 %v578
        %582 = vmatprep.subr.bf16.mxu0 0
        %583 = vmatpush1.bf16.xpose.msra.mxu0 0
        %584 = vmatprep.subr.bf16.mxu0 0
        %585 = vmatpush1.bf16.xpose.msra.mxu0 0
        %586 = vmatprep.subr.bf16.mxu0 0
        %587 = vmatpush1.bf16.xpose.msra.mxu0 0
        %588 = vmatprep.subr.bf16.mxu0 0
        %589 = vmatpush1.bf16.xpose.msra.mxu0 0
        %590 = vmatprep.subr.bf16.mxu0 0
        %591 = vmatpush1.bf16.xpose.msra.mxu0 0
        %592 = vmatprep.subr.bf16.mxu0 0
        %593 = vmatpush1.bf16.xpose.msra.mxu0 0
        %594 = vmatprep.subr.bf16.mxu0 0
        %595 = vmatpush1.bf16.xpose.msra.mxu0 0
        %596 = vmatprep.subr.bf16.mxu0 0
        %597 = vmatpush1.bf16.xpose.msra.mxu0 0
        %598 = vmatprep.subr.bf16.mxu0 0
        %599 = vmatpush1.bf16.xpose.msra.mxu0 0
        %600 = vmatprep.subr.bf16.mxu0 0
        %601 = vmatpush1.bf16.xpose.msra.mxu0 0
        %602 = vmatprep.subr.bf16.mxu0 0
        %603 = vmatpush1.bf16.xpose.msra.mxu0 0
        %604 = vmatprep.subr.bf16.mxu0 0
        %605 = vmatpush1.bf16.xpose.msra.mxu0 0
        %606 = vmatprep.subr.bf16.mxu0 0
        %607 = vmatpush1.bf16.xpose.msra.mxu0 0
        %608 = vmatprep.subr.bf16.mxu0 0
        %609 = vmatpush1.bf16.xpose.msra.mxu0 0
        %610 = vmatprep.subr.bf16.mxu0 0
        %611 = vmatpush1.bf16.xpose.msra.mxu0 0
        %612 = vmatprep.mubr.bf16.mxu0 0
        %613 = vmatmul.mubr.bf16.gmra.mrb[0].mxu0 %v575
        %v614 = vpop.f32.mrb[0].mxu0
        %v615 = vadd.f32 %v395, %v614
        %v616 = vpop.f32.mrb[0].mxu0
        %v617 = vpop.f32.mrb[0].mxu0
        %v618 = vpop.f32.mrb[0].mxu0
        %619 = vdwg.mxu0
        %v620 = vsel %vm462, %v615, -inf
        %621 = vmax.xlane.f32.xlu0 %v620
        %v622 = vpop.xlane.xlu0 %621
        %v623 = vsub.f32 %v615, %v622
        %v624 = vmul.f32 %v623, 1.442695
        %v625 = vpow.pop %v624
        %v626 = vsel %vm462, %v625, 0.0
        %627 = vadd.xlane.f32.xlu0 %v626
        %v628 = vpop.xlane.xlu0 %627
        %v629 = vrcp.pop %v628
        %v630 = vmul.f32 %v625, %v629
        %v631 = vpack.c.bf16 %v630, %v630
        %632 = vrot.lane.b32.xlu0 %v458, 56
        %v633 = vpop.permute.xlu0 %632
        %v635 = vsel %vm462, %v631, 0
        %v638 = vsel %vm526, %v633, 0
        %640 = vmatprep.subr.bf16.mxu0 0
        %641 = vmatpush1.bf16.msra.mxu0 %v638
        %642 = vmatprep.subr.bf16.mxu0 0
        %643 = vmatpush1.bf16.msra.mxu0 0
        %644 = vmatprep.subr.bf16.mxu0 0
        %645 = vmatpush1.bf16.msra.mxu0 0
        %646 = vmatprep.subr.bf16.mxu0 0
        %647 = vmatpush1.bf16.msra.mxu0 0
        %648 = vmatprep.subr.bf16.mxu0 0
        %649 = vmatpush1.bf16.msra.mxu0 0
        %650 = vmatprep.subr.bf16.mxu0 0
        %651 = vmatpush1.bf16.msra.mxu0 0
        %652 = vmatprep.subr.bf16.mxu0 0
        %653 = vmatpush1.bf16.msra.mxu0 0
        %654 = vmatprep.subr.bf16.mxu0 0
        %655 = vmatpush1.bf16.msra.mxu0 0
        %656 = vmatprep.subr.bf16.mxu0 0
        %657 = vmatpush1.bf16.msra.mxu0 0
        %658 = vmatprep.subr.bf16.mxu0 0
        %659 = vmatpush1.bf16.msra.mxu0 0
        %660 = vmatprep.subr.bf16.mxu0 0
        %661 = vmatpush1.bf16.msra.mxu0 0
        %662 = vmatprep.subr.bf16.mxu0 0
        %663 = vmatpush1.bf16.msra.mxu0 0
        %664 = vmatprep.subr.bf16.mxu0 0
        %665 = vmatpush1.bf16.msra.mxu0 0
        %666 = vmatprep.subr.bf16.mxu0 0
        %667 = vmatpush1.bf16.msra.mxu0 0
        %668 = vmatprep.subr.bf16.mxu0 0
        %669 = vmatpush1.bf16.msra.mxu0 0
        %670 = vmatprep.subr.bf16.mxu0 0
        %671 = vmatpush1.bf16.msra.mxu0 0
        %672 = vmatprep.mubr.bf16.mxu0 0
        %673 = vmatmul.mubr.bf16.gmra.mrb[0].mxu0 %v635
        %v674 = vpop.f32.mrb[0].mxu0
        %v675 = vadd.f32 0.0, %v674
        %v676 = vpop.f32.mrb[0].mxu0
        %v677 = vpop.f32.mrb[0].mxu0
        %v678 = vpop.f32.mrb[0].mxu0
        %679 = vdwg.mxu0
        %680 = vrot.lane.b32.xlu0 %v458, 112
        %v681 = vpop.permute.xlu0 %680
        %682 = vrot.lane.b32.xlu0 %v458, 80
        %v683 = vpop.permute.xlu0 %682
        %v685 = vsel %vm462, %v681, 0
        %v688 = vsel %vm462, %v683, 0
        %690 = vmatprep.subr.bf16.mxu0 0
        %691 = vmatpush1.bf16.xpose.msra.mxu0 %v688
        %692 = vmatprep.subr.bf16.mxu0 0
        %693 = vmatpush1.bf16.xpose.msra.mxu0 0
        %694 = vmatprep.subr.bf16.mxu0 0
        %695 = vmatpush1.bf16.xpose.msra.mxu0 0
        %696 = vmatprep.subr.bf16.mxu0 0
        %697 = vmatpush1.bf16.xpose.msra.mxu0 0
        %698 = vmatprep.subr.bf16.mxu0 0
        %699 = vmatpush1.bf16.xpose.msra.mxu0 0
        %700 = vmatprep.subr.bf16.mxu0 0
        %701 = vmatpush1.bf16.xpose.msra.mxu0 0
        %702 = vmatprep.subr.bf16.mxu0 0
        %703 = vmatpush1.bf16.xpose.msra.mxu0 0
        %704 = vmatprep.subr.bf16.mxu0 0
        %705 = vmatpush1.bf16.xpose.msra.mxu0 0
        %706 = vmatprep.subr.bf16.mxu0 0
        %707 = vmatpush1.bf16.xpose.msra.mxu0 0
        %708 = vmatprep.subr.bf16.mxu0 0
        %709 = vmatpush1.bf16.xpose.msra.mxu0 0
        %710 = vmatprep.subr.bf16.mxu0 0
        %711 = vmatpush1.bf16.xpose.msra.mxu0 0
        %712 = vmatprep.subr.bf16.mxu0 0
        %713 = vmatpush1.bf16.xpose.msra.mxu0 0
        %714 = vmatprep.subr.bf16.mxu0 0
        %715 = vmatpush1.bf16.xpose.msra.mxu0 0
        %716 = vmatprep.subr.bf16.mxu0 0
        %717 = vmatpush1.bf16.xpose.msra.mxu0 0
        %718 = vmatprep.subr.bf16.mxu0 0
        %719 = vmatpush1.bf16.xpose.msra.mxu0 0
        %720 = vmatprep.subr.bf16.mxu0 0
        %721 = vmatpush1.bf16.xpose.msra.mxu0 0
        %722 = vmatprep.mubr.bf16.mxu0 0
        %723 = vmatmul.mubr.bf16.gmra.mrb[0].mxu0 %v685
        %v724 = vpop.f32.mrb[0].mxu0
        %v725 = vadd.f32 %v395, %v724
        %v726 = vpop.f32.mrb[0].mxu0
        %v727 = vpop.f32.mrb[0].mxu0
        %v728 = vpop.f32.mrb[0].mxu0
        %729 = vdwg.mxu0
        %v730 = vsel %vm462, %v725, -inf
        %731 = vmax.xlane.f32.xlu0 %v730
        %v732 = vpop.xlane.xlu0 %731
        %v733 = vsub.f32 %v725, %v732
        %v734 = vmul.f32 %v733, 1.442695
        %v735 = vpow.pop %v734
        %v736 = vsel %vm462, %v735, 0.0
        %737 = vadd.xlane.f32.xlu0 %v736
        %v738 = vpop.xlane.xlu0 %737
        %v739 = vrcp.pop %v738
        %v740 = vmul.f32 %v735, %v739
        %v741 = vpack.c.bf16 %v740, %v740
        %742 = vrot.lane.b32.xlu0 %v458, 48
        %v743 = vpop.permute.xlu0 %742
        %v745 = vsel %vm462, %v741, 0
        %v748 = vsel %vm526, %v743, 0
        %750 = vmatprep.subr.bf16.mxu0 0
        %751 = vmatpush1.bf16.msra.mxu0 %v748
        %752 = vmatprep.subr.bf16.mxu0 0
        %753 = vmatpush1.bf16.msra.mxu0 0
        %754 = vmatprep.subr.bf16.mxu0 0
        %755 = vmatpush1.bf16.msra.mxu0 0
        %756 = vmatprep.subr.bf16.mxu0 0
        %757 = vmatpush1.bf16.msra.mxu0 0
        %758 = vmatprep.subr.bf16.mxu0 0
        %759 = vmatpush1.bf16.msra.mxu0 0
        %760 = vmatprep.subr.bf16.mxu0 0
        %761 = vmatpush1.bf16.msra.mxu0 0
        %762 = vmatprep.subr.bf16.mxu0 0
        %763 = vmatpush1.bf16.msra.mxu0 0
        %764 = vmatprep.subr.bf16.mxu0 0
        %765 = vmatpush1.bf16.msra.mxu0 0
        %766 = vmatprep.subr.bf16.mxu0 0
        %767 = vmatpush1.bf16.msra.mxu0 0
        %768 = vmatprep.subr.bf16.mxu0 0
        %769 = vmatpush1.bf16.msra.mxu0 0
        %770 = vmatprep.subr.bf16.mxu0 0
        %771 = vmatpush1.bf16.msra.mxu0 0
        %772 = vmatprep.subr.bf16.mxu0 0
        %773 = vmatpush1.bf16.msra.mxu0 0
        %774 = vmatprep.subr.bf16.mxu0 0
        %775 = vmatpush1.bf16.msra.mxu0 0
        %776 = vmatprep.subr.bf16.mxu0 0
        %777 = vmatpush1.bf16.msra.mxu0 0
        %778 = vmatprep.subr.bf16.mxu0 0
        %779 = vmatpush1.bf16.msra.mxu0 0
        %780 = vmatprep.subr.bf16.mxu0 0
        %781 = vmatpush1.bf16.msra.mxu0 0
        %782 = vmatprep.mubr.bf16.mxu0 0
        %783 = vmatmul.mubr.bf16.gmra.mrb[0].mxu0 %v745
        %v784 = vpop.f32.mrb[0].mxu0
        %v785 = vadd.f32 0.0, %v784
        %v786 = vpop.f32.mrb[0].mxu0
        %v787 = vpop.f32.mrb[0].mxu0
        %v788 = vpop.f32.mrb[0].mxu0
        %789 = vdwg.mxu0
        %790 = vrot.lane.b32.xlu0 %v458, 104
        %v791 = vpop.permute.xlu0 %790
        %792 = vrot.lane.b32.xlu0 %v458, 72
        %v793 = vpop.permute.xlu0 %792
        %v795 = vsel %vm462, %v791, 0
        %v798 = vsel %vm462, %v793, 0
        %800 = vmatprep.subr.bf16.mxu0 0
        %801 = vmatpush1.bf16.xpose.msra.mxu0 %v798
        %802 = vmatprep.subr.bf16.mxu0 0
        %803 = vmatpush1.bf16.xpose.msra.mxu0 0
        %804 = vmatprep.subr.bf16.mxu0 0
        %805 = vmatpush1.bf16.xpose.msra.mxu0 0
        %806 = vmatprep.subr.bf16.mxu0 0
        %807 = vmatpush1.bf16.xpose.msra.mxu0 0
        %808 = vmatprep.subr.bf16.mxu0 0
        %809 = vmatpush1.bf16.xpose.msra.mxu0 0
        %810 = vmatprep.subr.bf16.mxu0 0
        %811 = vmatpush1.bf16.xpose.msra.mxu0 0
        %812 = vmatprep.subr.bf16.mxu0 0
        %813 = vmatpush1.bf16.xpose.msra.mxu0 0
        %814 = vmatprep.subr.bf16.mxu0 0
        %815 = vmatpush1.bf16.xpose.msra.mxu0 0
        %816 = vmatprep.subr.bf16.mxu0 0
        %817 = vmatpush1.bf16.xpose.msra.mxu0 0
        %818 = vmatprep.subr.bf16.mxu0 0
        %819 = vmatpush1.bf16.xpose.msra.mxu0 0
        %820 = vmatprep.subr.bf16.mxu0 0
        %821 = vmatpush1.bf16.xpose.msra.mxu0 0
        %822 = vmatprep.subr.bf16.mxu0 0
        %823 = vmatpush1.bf16.xpose.msra.mxu0 0
        %824 = vmatprep.subr.bf16.mxu0 0
        %825 = vmatpush1.bf16.xpose.msra.mxu0 0
        %826 = vmatprep.subr.bf16.mxu0 0
        %827 = vmatpush1.bf16.xpose.msra.mxu0 0
        %828 = vmatprep.subr.bf16.mxu0 0
        %829 = vmatpush1.bf16.xpose.msra.mxu0 0
        %830 = vmatprep.subr.bf16.mxu0 0
        %831 = vmatpush1.bf16.xpose.msra.mxu0 0
        %832 = vmatprep.mubr.bf16.mxu0 0
        %833 = vmatmul.mubr.bf16.gmra.mrb[0].mxu0 %v795
        %v834 = vpop.f32.mrb[0].mxu0
        %v835 = vadd.f32 %v395, %v834
        %v836 = vpop.f32.mrb[0].mxu0
        %v837 = vpop.f32.mrb[0].mxu0
        %v838 = vpop.f32.mrb[0].mxu0
        %839 = vdwg.mxu0
        %v840 = vsel %vm462, %v835, -inf
        %841 = vmax.xlane.f32.xlu0 %v840
        %v842 = vpop.xlane.xlu0 %841
        %v843 = vsub.f32 %v835, %v842
        %v844 = vmul.f32 %v843, 1.442695
        %v845 = vpow.pop %v844
        %v846 = vsel %vm462, %v845, 0.0
        %847 = vadd.xlane.f32.xlu0 %v846
        %v848 = vpop.xlane.xlu0 %847
        %v849 = vrcp.pop %v848
        %v850 = vmul.f32 %v845, %v849
        %v851 = vpack.c.bf16 %v850, %v850
        %852 = vrot.lane.b32.xlu0 %v458, 40
        %v853 = vpop.permute.xlu0 %852
        %v855 = vsel %vm462, %v851, 0
        %v858 = vsel %vm526, %v853, 0
        %860 = vmatprep.subr.bf16.mxu0 0
        %861 = vmatpush1.bf16.msra.mxu0 %v858
        %862 = vmatprep.subr.bf16.mxu0 0
        %863 = vmatpush1.bf16.msra.mxu0 0
        %864 = vmatprep.subr.bf16.mxu0 0
        %865 = vmatpush1.bf16.msra.mxu0 0
        %866 = vmatprep.subr.bf16.mxu0 0
        %867 = vmatpush1.bf16.msra.mxu0 0
        %868 = vmatprep.subr.bf16.mxu0 0
        %869 = vmatpush1.bf16.msra.mxu0 0
        %870 = vmatprep.subr.bf16.mxu0 0
        %871 = vmatpush1.bf16.msra.mxu0 0
        %872 = vmatprep.subr.bf16.mxu0 0
        %873 = vmatpush1.bf16.msra.mxu0 0
        %874 = vmatprep.subr.bf16.mxu0 0
        %875 = vmatpush1.bf16.msra.mxu0 0
        %876 = vmatprep.subr.bf16.mxu0 0
        %877 = vmatpush1.bf16.msra.mxu0 0
        %878 = vmatprep.subr.bf16.mxu0 0
        %879 = vmatpush1.bf16.msra.mxu0 0
        %880 = vmatprep.subr.bf16.mxu0 0
        %881 = vmatpush1.bf16.msra.mxu0 0
        %882 = vmatprep.subr.bf16.mxu0 0
        %883 = vmatpush1.bf16.msra.mxu0 0
        %884 = vmatprep.subr.bf16.mxu0 0
        %885 = vmatpush1.bf16.msra.mxu0 0
        %886 = vmatprep.subr.bf16.mxu0 0
        %887 = vmatpush1.bf16.msra.mxu0 0
        %888 = vmatprep.subr.bf16.mxu0 0
        %889 = vmatpush1.bf16.msra.mxu0 0
        %890 = vmatprep.subr.bf16.mxu0 0
        %891 = vmatpush1.bf16.msra.mxu0 0
        %892 = vmatprep.mubr.bf16.mxu0 0
        %893 = vmatmul.mubr.bf16.gmra.mrb[0].mxu0 %v855
        %v894 = vpop.f32.mrb[0].mxu0
        %v895 = vadd.f32 0.0, %v894
        %v896 = vpop.f32.mrb[0].mxu0
        %v897 = vpop.f32.mrb[0].mxu0
        %v898 = vpop.f32.mrb[0].mxu0
        %899 = vdwg.mxu0
        %901 = vrot.lane.b32.xlu0 %v675, 8
        %v902 = vpop.permute.xlu0 %901
        %905 = vrot.lane.b32.xlu0 %v785, 16
        %v906 = vpop.permute.xlu0 %905
        %909 = vrot.lane.b32.xlu0 %v895, 24
        %v910 = vpop.permute.xlu0 %909
        %v912 = vsel %vm462, %v565, %v902
        %vm913 = vcmask 130048
        %v914 = vsel %vm913, %v912, %v906
        %vm915 = vcmask 195584
        %v916 = vsel %vm915, %v914, %v910
        %v917 = vpack.c.bf16 %v916, %v916
        %v918 = vld [vmem:[%s3] sm:$0xf]
        %v919 = vld [vmem:[%s3 + $0x4] sm:$0xf]
        %v920 = vld [vmem:[%s3 + $0x8] sm:$0xf]
        %v921 = vld [vmem:[%s3 + $0xc] sm:$0xf]
        %v926 = vunpack.c.l.b16 %v918
        %v927 = vunpack.c.l.b16 %v919
        %v928 = vunpack.c.l.b16 %v920
        %v929 = vunpack.c.l.b16 %v921
        %v930 = vpack.c.b16 %v927, %v926
        %v931 = vpack.c.b16 %v929, %v928
        %v935 = vsel %vm414, %v917, 0
        %937 = vmatprep.subr.bf16.mxu0 0
        %938 = vmatpush1.bf16.msra.mxu0 %v930
        %939 = vmatprep.subr.bf16.mxu0 0
        %940 = vmatpush1.bf16.msra.mxu0 %v931
        %941 = vmatprep.subr.bf16.mxu0 0
        %942 = vmatpush1.bf16.msra.mxu0 0
        %943 = vmatprep.subr.bf16.mxu0 0
        %944 = vmatpush1.bf16.msra.mxu0 0
        %945 = vmatprep.subr.bf16.mxu0 0
        %946 = vmatpush1.bf16.msra.mxu0 0
        %947 = vmatprep.subr.bf16.mxu0 0
        %948 = vmatpush1.bf16.msra.mxu0 0
        %949 = vmatprep.subr.bf16.mxu0 0
        %950 = vmatpush1.bf16.msra.mxu0 0
        %951 = vmatprep.subr.bf16.mxu0 0
        %952 = vmatpush1.bf16.msra.mxu0 0
        %953 = vmatprep.subr.bf16.mxu0 0
        %954 = vmatpush1.bf16.msra.mxu0 0
        %955 = vmatprep.subr.bf16.mxu0 0
        %956 = vmatpush1.bf16.msra.mxu0 0
        %957 = vmatprep.subr.bf16.mxu0 0
        %958 = vmatpush1.bf16.msra.mxu0 0
        %959 = vmatprep.subr.bf16.mxu0 0
        %960 = vmatpush1.bf16.msra.mxu0 0
        %961 = vmatprep.subr.bf16.mxu0 0
        %962 = vmatpush1.bf16.msra.mxu0 0
        %963 = vmatprep.subr.bf16.mxu0 0
        %964 = vmatpush1.bf16.msra.mxu0 0
        %965 = vmatprep.subr.bf16.mxu0 0
        %966 = vmatpush1.bf16.msra.mxu0 0
        %967 = vmatprep.subr.bf16.mxu0 0
        %968 = vmatpush1.bf16.msra.mxu0 0
        %969 = vmatprep.mubr.bf16.mxu0 0
        %970 = vmatmul.mubr.bf16.gmra.mrb[0].mxu0 %v935
        %v971 = vpop.f32.mrb[0].mxu0
        %v972 = vadd.f32 0.0, %v971
        %v973 = vpop.f32.mrb[0].mxu0
        %v974 = vpop.f32.mrb[0].mxu0
        %v975 = vpop.f32.mrb[0].mxu0
        %976 = vdwg.mxu0
        %v977 = vadd.f32 %v396, %v972
        %v978 = vsel %vm414, %v977, 0.0
        %979 = vadd.xlane.f32.xlu0 %v978
        %v980 = vpop.xlane.xlu0 %979
        %v981 = vrcp.pop 32.0
        %v982 = vmul.f32 %v980, %v981
        %v983 = vsub.f32 %v977, %v982
        %v984 = vmul.f32 %v983, %v983
        %v985 = vsel %vm414, %v984, 0.0
        %986 = vadd.xlane.f32.xlu0 %v985
        %v987 = vpop.xlane.xlu0 %986
        %v988 = vmul.f32 %v987, %v981
        %v989 = vadd.f32 %v988, 1e-05
        %v990 = vrsqrt.pop %v989
        %v991 = vmul.f32 %v983, %v990
        %v992 = vld [vmem:[%s4] sm:$0x1]
        %v994 = vlaneseq
        %v995 = vshrl.u32 %v994, 7
        %v996 = vsub.s32 0, %v995
        %v997 = vrot.slane %v992, %v996
        %v999 = vmul.f32 %v991, %v997
        %v1000 = vld [vmem:[%s5] sm:$0x1]
        %v1002 = vlaneseq
        %v1003 = vshrl.u32 %v1002, 7
        %v1004 = vsub.s32 0, %v1003
        %v1005 = vrot.slane %v1000, %v1004
        %v1007 = vadd.f32 %v999, %v1005
        %v1008 = vpack.c.bf16 %v1007, %v1007
        %v1009 = vld [vmem:[%s6] sm:$0xf]
        %v1010 = vld [vmem:[%s6 + $0x4] sm:$0xf]
        %v1011 = vld [vmem:[%s6 + $0x8] sm:$0xf]
        %v1012 = vld [vmem:[%s6 + $0xc] sm:$0xf]
        %v1013 = vld [vmem:[%s7] sm:$0x1]
        %v1015 = vlaneseq
        %v1016 = vshrl.u32 %v1015, 7
        %v1017 = vsub.s32 0, %v1016
        %v1018 = vrot.slane %v1013, %v1017
        %v1024 = vunpack.c.l.b16 %v1009
        %v1025 = vunpack.c.l.b16 %v1010
        %v1026 = vunpack.c.l.b16 %v1011
        %v1027 = vunpack.c.l.b16 %v1012
        %v1028 = vpack.c.b16 %v1025, %v1024
        %v1029 = vpack.c.b16 %v1027, %v1026
        %v1033 = vsel %vm414, %v1008, 0
        %1035 = vmatprep.subr.bf16.mxu0 0
        %1036 = vmatpush1.bf16.msra.mxu0 %v1028
        %1037 = vmatprep.subr.bf16.mxu0 0
        %1038 = vmatpush1.bf16.msra.mxu0 %v1029
        %1039 = vmatprep.subr.bf16.mxu0 0
        %1040 = vmatpush1.bf16.msra.mxu0 0
        %1041 = vmatprep.subr.bf16.mxu0 0
        %1042 = vmatpush1.bf16.msra.mxu0 0
        %1043 = vmatprep.subr.bf16.mxu0 0
        %1044 = vmatpush1.bf16.msra.mxu0 0
        %1045 = vmatprep.subr.bf16.mxu0 0
        %1046 = vmatpush1.bf16.msra.mxu0 0
        %1047 = vmatprep.subr.bf16.mxu0 0
        %1048 = vmatpush1.bf16.msra.mxu0 0
        %1049 = vmatprep.subr.bf16.mxu0 0
        %1050 = vmatpush1.bf16.msra.mxu0 0
        %1051 = vmatprep.subr.bf16.mxu0 0
        %1052 = vmatpush1.bf16.msra.mxu0 0
        %1053 = vmatprep.subr.bf16.mxu0 0
        %1054 = vmatpush1.bf16.msra.mxu0 0
        %1055 = vmatprep.subr.bf16.mxu0 0
        %1056 = vmatpush1.bf16.msra.mxu0 0
        %1057 = vmatprep.subr.bf16.mxu0 0
        %1058 = vmatpush1.bf16.msra.mxu0 0
        %1059 = vmatprep.subr.bf16.mxu0 0
        %1060 = vmatpush1.bf16.msra.mxu0 0
        %1061 = vmatprep.subr.bf16.mxu0 0
        %1062 = vmatpush1.bf16.msra.mxu0 0
        %1063 = vmatprep.subr.bf16.mxu0 0
        %1064 = vmatpush1.bf16.msra.mxu0 0
        %1065 = vmatprep.subr.bf16.mxu0 0
        %1066 = vmatpush1.bf16.msra.mxu0 0
        %1067 = vmatprep.mubr.bf16.mxu0 0
        %1068 = vmatmul.mubr.bf16.gmra.mrb[0].mxu0 %v1033
        %v1069 = vpop.f32.mrb[0].mxu0
        %v1070 = vadd.f32 %v1018, %v1069
        %v1071 = vpop.f32.mrb[0].mxu0
        %v1072 = vpop.f32.mrb[0].mxu0
        %v1073 = vpop.f32.mrb[0].mxu0
        %1074 = vdwg.mxu0
        %v1075 = vmax.f32 %v1070, 0.0
        %v1076 = vpack.c.bf16 %v1075, %v1075
        %v1077 = vld [vmem:[%s8] sm:$0xf]
        %v1078 = vld [vmem:[%s8 + $0x4] sm:$0xf]
        %v1079 = vld [vmem:[%s8 + $0x8] sm:$0xf]
        %v1080 = vld [vmem:[%s8 + $0xc] sm:$0xf]
        %v1081 = vld [vmem:[%s8 + $0x10] sm:$0xf]
        %v1082 = vld [vmem:[%s8 + $0x14] sm:$0xf]
        %v1083 = vld [vmem:[%s8 + $0x18] sm:$0xf]
        %v1084 = vld [vmem:[%s8 + $0x1c] sm:$0xf]
        %v1085 = vld [vmem:[%s9] sm:$0x1]
        %v1087 = vlaneseq
        %v1088 = vshrl.u32 %v1087, 7
        %v1089 = vsub.s32 0, %v1088
        %v1090 = vrot.slane %v1085, %v1089
        %v1100 = vunpack.c.l.b16 %v1077
        %v1101 = vunpack.c.l.b16 %v1078
        %v1102 = vunpack.c.l.b16 %v1079
        %v1103 = vunpack.c.l.b16 %v1080
        %v1104 = vunpack.c.l.b16 %v1081
        %v1105 = vunpack.c.l.b16 %v1082
        %v1106 = vunpack.c.l.b16 %v1083
        %v1107 = vunpack.c.l.b16 %v1084
        %v1108 = vpack.c.b16 %v1101, %v1100
        %v1109 = vpack.c.b16 %v1103, %v1102
        %v1110 = vpack.c.b16 %v1105, %v1104
        %v1111 = vpack.c.b16 %v1107, %v1106
        %vm1116 = vcmask 523264
        %v1118 = vsel %vm1116, %v1076, 0
        %1120 = vmatprep.subr.bf16.mxu0 0
        %1121 = vmatpush1.bf16.msra.mxu0 %v1108
        %1122 = vmatprep.subr.bf16.mxu0 0
        %1123 = vmatpush1.bf16.msra.mxu0 %v1109
        %1124 = vmatprep.subr.bf16.mxu0 0
        %1125 = vmatpush1.bf16.msra.mxu0 %v1110
        %1126 = vmatprep.subr.bf16.mxu0 0
        %1127 = vmatpush1.bf16.msra.mxu0 %v1111
        %1128 = vmatprep.subr.bf16.mxu0 0
        %1129 = vmatpush1.bf16.msra.mxu0 0
        %1130 = vmatprep.subr.bf16.mxu0 0
        %1131 = vmatpush1.bf16.msra.mxu0 0
        %1132 = vmatprep.subr.bf16.mxu0 0
        %1133 = vmatpush1.bf16.msra.mxu0 0
        %1134 = vmatprep.subr.bf16.mxu0 0
        %1135 = vmatpush1.bf16.msra.mxu0 0
        %1136 = vmatprep.subr.bf16.mxu0 0
        %1137 = vmatpush1.bf16.msra.mxu0 0
        %1138 = vmatprep.subr.bf16.mxu0 0
        %1139 = vmatpush1.bf16.msra.mxu0 0
        %1140 = vmatprep.subr.bf16.mxu0 0
        %1141 = vmatpush1.bf16.msra.mxu0 0
        %1142 = vmatprep.subr.bf16.mxu0 0
        %1143 = vmatpush1.bf16.msra.mxu0 0
        %1144 = vmatprep.subr.bf16.mxu0 0
        %1145 = vmatpush1.bf16.msra.mxu0 0
        %1146 = vmatprep.subr.bf16.mxu0 0
        %1147 = vmatpush1.bf16.msra.mxu0 0
        %1148 = vmatprep.subr.bf16.mxu0 0
        %1149 = vmatpush1.bf16.msra.mxu0 0
        %1150 = vmatprep.subr.bf16.mxu0 0
        %1151 = vmatpush1.bf16.msra.mxu0 0
        %1152 = vmatprep.mubr.bf16.mxu0 0
        %1153 = vmatmul.mubr.bf16.gmra.mrb[0].mxu0 %v1118
        %v1154 = vpop.f32.mrb[0].mxu0
        %v1155 = vadd.f32 %v1090, %v1154
        %v1156 = vpop.f32.mrb[0].mxu0
        %v1157 = vpop.f32.mrb[0].mxu0
        %v1158 = vpop.f32.mrb[0].mxu0
        %1159 = vdwg.mxu0
        %v1160 = vadd.f32 %v1007, %v1155
        %v1161 = vsel %vm414, %v1160, 0.0
        %1162 = vadd.xlane.f32.xlu0 %v1161
        %v1163 = vpop.xlane.xlu0 %1162
        %v1164 = vmul.f32 %v1163, %v981
        %v1165 = vsub.f32 %v1160, %v1164
        %v1166 = vmul.f32 %v1165, %v1165
        %v1167 = vsel %vm414, %v1166, 0.0
        %1168 = vadd.xlane.f32.xlu0 %v1167
        %v1169 = vpop.xlane.xlu0 %1168
        %v1170 = vmul.f32 %v1169, %v981
        %v1171 = vadd.f32 %v1170, 1e-05
        %v1172 = vrsqrt.pop %v1171
        %v1173 = vmul.f32 %v1165, %v1172
        %v1174 = vld [vmem:[%s10] sm:$0x1]
        %v1176 = vlaneseq
        %v1177 = vshrl.u32 %v1176, 7
        %v1178 = vsub.s32 0, %v1177
        %v1179 = vrot.slane %v1174, %v1178
        %v1181 = vmul.f32 %v1173, %v1179
        %v1182 = vld [vmem:[%s11] sm:$0x1]
        %v1184 = vlaneseq
        %v1185 = vshrl.u32 %v1184, 7
        %v1186 = vsub.s32 0, %v1185
        %v1187 = vrot.slane %v1182, %v1186
        %v1189 = vadd.f32 %v1181, %v1187
        %v1190 = vpack.c.bf16 %v1189, %v1189
        %s1191 = scalar_lea.vmem %s2, 16
        %v1192 = vld [vmem:[%s1191] sm:$0xf]
        %v1193 = vld [vmem:[%s1191 + $0x4] sm:$0xf]
        %v1194 = vld [vmem:[%s1191 + $0x8] sm:$0xf]
        %v1195 = vld [vmem:[%s1191 + $0xc] sm:$0xf]
        %v1200 = vunpack.c.l.b16 %v1192
        %v1201 = vunpack.c.l.b16 %v1193
        %v1202 = vunpack.c.l.b16 %v1194
        %v1203 = vunpack.c.l.b16 %v1195
        %v1204 = vpack.c.b16 %v1201, %v1200
        %v1205 = vpack.c.b16 %v1203, %v1202
        %v1209 = vsel %vm414, %v1190, 0
        %1211 = vmatprep.subr.bf16.mxu0 0
        %1212 = vmatpush1.bf16.msra.mxu0 %v1204
        %1213 = vmatprep.subr.bf16.mxu0 0
        %1214 = vmatpush1.bf16.msra.mxu0 %v1205
        %1215 = vmatprep.subr.bf16.mxu0 0
        %1216 = vmatpush1.bf16.msra.mxu0 0
        %1217 = vmatprep.subr.bf16.mxu0 0
        %1218 = vmatpush1.bf16.msra.mxu0 0
        %1219 = vmatprep.subr.bf16.mxu0 0
        %1220 = vmatpush1.bf16.msra.mxu0 0
        %1221 = vmatprep.subr.bf16.mxu0 0
        %1222 = vmatpush1.bf16.msra.mxu0 0
        %1223 = vmatprep.subr.bf16.mxu0 0
        %1224 = vmatpush1.bf16.msra.mxu0 0
        %1225 = vmatprep.subr.bf16.mxu0 0
        %1226 = vmatpush1.bf16.msra.mxu0 0
        %1227 = vmatprep.subr.bf16.mxu0 0
        %1228 = vmatpush1.bf16.msra.mxu0 0
        %1229 = vmatprep.subr.bf16.mxu0 0
        %1230 = vmatpush1.bf16.msra.mxu0 0
        %1231 = vmatprep.subr.bf16.mxu0 0
        %1232 = vmatpush1.bf16.msra.mxu0 0
        %1233 = vmatprep.subr.bf16.mxu0 0
        %1234 = vmatpush1.bf16.msra.mxu0 0
        %1235 = vmatprep.subr.bf16.mxu0 0
        %1236 = vmatpush1.bf16.msra.mxu0 0
        %1237 = vmatprep.subr.bf16.mxu0 0
        %1238 = vmatpush1.bf16.msra.mxu0 0
        %1239 = vmatprep.subr.bf16.mxu0 0
        %1240 = vmatpush1.bf16.msra.mxu0 0
        %1241 = vmatprep.subr.bf16.mxu0 0
        %1242 = vmatpush1.bf16.msra.mxu0 0
        %1243 = vmatprep.mubr.bf16.mxu0 0
        %1244 = vmatmul.mubr.bf16.gmra.mrb[0].mxu0 %v1209
        %v1245 = vpop.f32.mrb[0].mxu0
        %v1246 = vadd.f32 0.0, %v1245
        %v1247 = vpop.f32.mrb[0].mxu0
        %v1248 = vpop.f32.mrb[0].mxu0
        %v1249 = vpop.f32.mrb[0].mxu0
        %1250 = vdwg.mxu0
        %v1251 = vpack.c.bf16 %v1246, %v1246
        %1253 = vrot.lane.b32.xlu0 %v1251, 96
        %v1254 = vpop.permute.xlu0 %1253
        %v1256 = vsel %vm462, %v1251, 0
        %v1259 = vsel %vm462, %v1254, 0
        %1261 = vmatprep.subr.bf16.mxu0 0
        %1262 = vmatpush1.bf16.xpose.msra.mxu0 %v1259
        %1263 = vmatprep.subr.bf16.mxu0 0
        %1264 = vmatpush1.bf16.xpose.msra.mxu0 0
        %1265 = vmatprep.subr.bf16.mxu0 0
        %1266 = vmatpush1.bf16.xpose.msra.mxu0 0
        %1267 = vmatprep.subr.bf16.mxu0 0
        %1268 = vmatpush1.bf16.xpose.msra.mxu0 0
        %1269 = vmatprep.subr.bf16.mxu0 0
        %1270 = vmatpush1.bf16.xpose.msra.mxu0 0
        %1271 = vmatprep.subr.bf16.mxu0 0
        %1272 = vmatpush1.bf16.xpose.msra.mxu0 0
        %1273 = vmatprep.subr.bf16.mxu0 0
        %1274 = vmatpush1.bf16.xpose.msra.mxu0 0
        %1275 = vmatprep.subr.bf16.mxu0 0
        %1276 = vmatpush1.bf16.xpose.msra.mxu0 0
        %1277 = vmatprep.subr.bf16.mxu0 0
        %1278 = vmatpush1.bf16.xpose.msra.mxu0 0
        %1279 = vmatprep.subr.bf16.mxu0 0
        %1280 = vmatpush1.bf16.xpose.msra.mxu0 0
        %1281 = vmatprep.subr.bf16.mxu0 0
        %1282 = vmatpush1.bf16.xpose.msra.mxu0 0
        %1283 = vmatprep.subr.bf16.mxu0 0
        %1284 = vmatpush1.bf16.xpose.msra.mxu0 0
        %1285 = vmatprep.subr.bf16.mxu0 0
        %1286 = vmatpush1.bf16.xpose.msra.mxu0 0
        %1287 = vmatprep.subr.bf16.mxu0 0
        %1288 = vmatpush1.bf16.xpose.msra.mxu0 0
        %1289 = vmatprep.subr.bf16.mxu0 0
        %1290 = vmatpush1.bf16.xpose.msra.mxu0 0
        %1291 = vmatprep.subr.bf16.mxu0 0
        %1292 = vmatpush1.bf16.xpose.msra.mxu0 0
        %1293 = vmatprep.mubr.bf16.mxu0 0
        %1294 = vmatmul.mubr.bf16.gmra.mrb[0].mxu0 %v1256
        %v1295 = vpop.f32.mrb[0].mxu0
        %v1296 = vadd.f32 %v395, %v1295
        %v1297 = vpop.f32.mrb[0].mxu0
        %v1298 = vpop.f32.mrb[0].mxu0
        %v1299 = vpop.f32.mrb[0].mxu0
        %1300 = vdwg.mxu0
        %v1301 = vsel %vm462, %v1296, -inf
        %1302 = vmax.xlane.f32.xlu0 %v1301
        %v1303 = vpop.xlane.xlu0 %1302
        %v1304 = vsub.f32 %v1296, %v1303
        %v1305 = vmul.f32 %v1304, 1.442695
        %v1306 = vpow.pop %v1305
        %v1307 = vsel %vm462, %v1306, 0.0
        %1308 = vadd.xlane.f32.xlu0 %v1307
        %v1309 = vpop.xlane.xlu0 %1308
        %v1310 = vrcp.pop %v1309
        %v1311 = vmul.f32 %v1306, %v1310
        %v1312 = vpack.c.bf16 %v1311, %v1311
        %1313 = vrot.lane.b32.xlu0 %v1251, 64
        %v1314 = vpop.permute.xlu0 %1313
        %v1316 = vsel %vm462, %v1312, 0
        %v1319 = vsel %vm526, %v1314, 0
        %1321 = vmatprep.subr.bf16.mxu0 0
        %1322 = vmatpush1.bf16.msra.mxu0 %v1319
        %1323 = vmatprep.subr.bf16.mxu0 0
        %1324 = vmatpush1.bf16.msra.mxu0 0
        %1325 = vmatprep.subr.bf16.mxu0 0
        %1326 = vmatpush1.bf16.msra.mxu0 0
        %1327 = vmatprep.subr.bf16.mxu0 0
        %1328 = vmatpush1.bf16.msra.mxu0 0
        %1329 = vmatprep.subr.bf16.mxu0 0
        %1330 = vmatpush1.bf16.msra.mxu0 0
        %1331 = vmatprep.subr.bf16.mxu0 0
        %1332 = vmatpush1.bf16.msra.mxu0 0
        %1333 = vmatprep.subr.bf16.mxu0 0
        %1334 = vmatpush1.bf16.msra.mxu0 0
        %1335 = vmatprep.subr.bf16.mxu0 0
        %1336 = vmatpush1.bf16.msra.mxu0 0
        %1337 = vmatprep.subr.bf16.mxu0 0
        %1338 = vmatpush1.bf16.msra.mxu0 0
        %1339 = vmatprep.subr.bf16.mxu0 0
        %1340 = vmatpush1.bf16.msra.mxu0 0
        %1341 = vmatprep.subr.bf16.mxu0 0
        %1342 = vmatpush1.bf16.msra.mxu0 0
        %1343 = vmatprep.subr.bf16.mxu0 0
        %1344 = vmatpush1.bf16.msra.mxu0 0
        %1345 = vmatprep.subr.bf16.mxu0 0
        %1346 = vmatpush1.bf16.msra.mxu0 0
        %1347 = vmatprep.subr.bf16.mxu0 0
        %1348 = vmatpush1.bf16.msra.mxu0 0
        %1349 = vmatprep.subr.bf16.mxu0 0
        %1350 = vmatpush1.bf16.msra.mxu0 0
        %1351 = vmatprep.subr.bf16.mxu0 0
        %1352 = vmatpush1.bf16.msra.mxu0 0
        %1353 = vmatprep.mubr.bf16.mxu0 0
        %1354 = vmatmul.mubr.bf16.gmra.mrb[0].mxu0 %v1316
        %v1355 = vpop.f32.mrb[0].mxu0
        %v1356 = vadd.f32 0.0, %v1355
        %v1357 = vpop.f32.mrb[0].mxu0
        %v1358 = vpop.f32.mrb[0].mxu0
        %v1359 = vpop.f32.mrb[0].mxu0
        %1360 = vdwg.mxu0
        %1361 = vrot.lane.b32.xlu0 %v1251, 120
        %v1362 = vpop.permute.xlu0 %1361
        %1363 = vrot.lane.b32.xlu0 %v1251, 88
        %v1364 = vpop.permute.xlu0 %1363
        %v1366 = vsel %vm462, %v1362, 0
        %v1369 = vsel %vm462, %v1364, 0
        %1371 = vmatprep.subr.bf16.mxu0 0
        %1372 = vmatpush1.bf16.xpose.msra.mxu0 %v1369
        %1373 = vmatprep.subr.bf16.mxu0 0
        %1374 = vmatpush1.bf16.xpose.msra.mxu0 0
        %1375 = vmatprep.subr.bf16.mxu0 0
        %1376 = vmatpush1.bf16.xpose.msra.mxu0 0
        %1377 = vmatprep.subr.bf16.mxu0 0
        %1378 = vmatpush1.bf16.xpose.msra.mxu0 0
        %1379 = vmatprep.subr.bf16.mxu0 0
        %1380 = vmatpush1.bf16.xpose.msra.mxu0 0
        %1381 = vmatprep.subr.bf16.mxu0 0
        %1382 = vmatpush1.bf16.xpose.msra.mxu0 0
        %1383 = vmatprep.subr.bf16.mxu0 0
        %1384 = vmatpush1.bf16.xpose.msra.mxu0 0
        %1385 = vmatprep.subr.bf16.mxu0 0
        %1386 = vmatpush1.bf16.xpose.msra.mxu0 0
        %1387 = vmatprep.subr.bf16.mxu0 0
        %1388 = vmatpush1.bf16.xpose.msra.mxu0 0
        %1389 = vmatprep.subr.bf16.mxu0 0
        %1390 = vmatpush1.bf16.xpose.msra.mxu0 0
        %1391 = vmatprep.subr.bf16.mxu0 0
        %1392 = vmatpush1.bf16.xpose.msra.mxu0 0
        %1393 = vmatprep.subr.bf16.mxu0 0
        %1394 = vmatpush1.bf16.xpose.msra.mxu0 0
        %1395 = vmatprep.subr.bf16.mxu0 0
        %1396 = vmatpush1.bf16.xpose.msra.mxu0 0
        %1397 = vmatprep.subr.bf16.mxu0 0
        %1398 = vmatpush1.bf16.xpose.msra.mxu0 0
        %1399 = vmatprep.subr.bf16.mxu0 0
        %1400 = vmatpush1.bf16.xpose.msra.mxu0 0
        %1401 = vmatprep.subr.bf16.mxu0 0
        %1402 = vmatpush1.bf16.xpose.msra.mxu0 0
        %1403 = vmatprep.mubr.bf16.mxu0 0
        %1404 = vmatmul.mubr.bf16.gmra.mrb[0].mxu0 %v1366
        %v1405 = vpop.f32.mrb[0].mxu0
        %v1406 = vadd.f32 %v395, %v1405
        %v1407 = vpop.f32.mrb[0].mxu0
        %v1408 = vpop.f32.mrb[0].mxu0
        %v1409 = vpop.f32.mrb[0].mxu0
        %1410 = vdwg.mxu0
        %v1411 = vsel %vm462, %v1406, -inf
        %1412 = vmax.xlane.f32.xlu0 %v1411
        %v1413 = vpop.xlane.xlu0 %1412
        %v1414 = vsub.f32 %v1406, %v1413
        %v1415 = vmul.f32 %v1414, 1.442695
        %v1416 = vpow.pop %v1415
        %v1417 = vsel %vm462, %v1416, 0.0
        %1418 = vadd.xlane.f32.xlu0 %v1417
        %v1419 = vpop.xlane.xlu0 %1418
        %v1420 = vrcp.pop %v1419
        %v1421 = vmul.f32 %v1416, %v1420
        %v1422 = vpack.c.bf16 %v1421, %v1421
        %1423 = vrot.lane.b32.xlu0 %v1251, 56
        %v1424 = vpop.permute.xlu0 %1423
        %v1426 = vsel %vm462, %v1422, 0
        %v1429 = vsel %vm526, %v1424, 0
        %1431 = vmatprep.subr.bf16.mxu0 0
        %1432 = vmatpush1.bf16.msra.mxu0 %v1429
        %1433 = vmatprep.subr.bf16.mxu0 0
        %1434 = vmatpush1.bf16.msra.mxu0 0
        %1435 = vmatprep.subr.bf16.mxu0 0
        %1436 = vmatpush1.bf16.msra.mxu0 0
        %1437 = vmatprep.subr.bf16.mxu0 0
        %1438 = vmatpush1.bf16.msra.mxu0 0
        %1439 = vmatprep.subr.bf16.mxu0 0
        %1440 = vmatpush1.bf16.msra.mxu0 0
        %1441 = vmatprep.subr.bf16.mxu0 0
        %1442 = vmatpush1.bf16.msra.mxu0 0
        %1443 = vmatprep.subr.bf16.mxu0 0
        %1444 = vmatpush1.bf16.msra.mxu0 0
        %1445 = vmatprep.subr.bf16.mxu0 0
        %1446 = vmatpush1.bf16.msra.mxu0 0
        %1447 = vmatprep.subr.bf16.mxu0 0
        %1448 = vmatpush1.bf16.msra.mxu0 0
        %1449 = vmatprep.subr.bf16.mxu0 0
        %1450 = vmatpush1.bf16.msra.mxu0 0
        %1451 = vmatprep.subr.bf16.mxu0 0
        %1452 = vmatpush1.bf16.msra.mxu0 0
        %1453 = vmatprep.subr.bf16.mxu0 0
        %1454 = vmatpush1.bf16.msra.mxu0 0
        %1455 = vmatprep.subr.bf16.mxu0 0
        %1456 = vmatpush1.bf16.msra.mxu0 0
        %1457 = vmatprep.subr.bf16.mxu0 0
        %1458 = vmatpush1.bf16.msra.mxu0 0
        %1459 = vmatprep.subr.bf16.mxu0 0
        %1460 = vmatpush1.bf16.msra.mxu0 0
        %1461 = vmatprep.subr.bf16.mxu0 0
        %1462 = vmatpush1.bf16.msra.mxu0 0
        %1463 = vmatprep.mubr.bf16.mxu0 0
        %1464 = vmatmul.mubr.bf16.gmra.mrb[0].mxu0 %v1426
        %v1465 = vpop.f32.mrb[0].mxu0
        %v1466 = vadd.f32 0.0, %v1465
        %v1467 = vpop.f32.mrb[0].mxu0
        %v1468 = vpop.f32.mrb[0].mxu0
        %v1469 = vpop.f32.mrb[0].mxu0
        %1470 = vdwg.mxu0
        %1471 = vrot.lane.b32.xlu0 %v1251, 112
        %v1472 = vpop.permute.xlu0 %1471
        %1473 = vrot.lane.b32.xlu0 %v1251, 80
        %v1474 = vpop.permute.xlu0 %1473
        %v1476 = vsel %vm462, %v1472, 0
        %v1479 = vsel %vm462, %v1474, 0
        %1481 = vmatprep.subr.bf16.mxu0 0
        %1482 = vmatpush1.bf16.xpose.msra.mxu0 %v1479
        %1483 = vmatprep.subr.bf16.mxu0 0
        %1484 = vmatpush1.bf16.xpose.msra.mxu0 0
        %1485 = vmatprep.subr.bf16.mxu0 0
        %1486 = vmatpush1.bf16.xpose.msra.mxu0 0
        %1487 = vmatprep.subr.bf16.mxu0 0
        %1488 = vmatpush1.bf16.xpose.msra.mxu0 0
        %1489 = vmatprep.subr.bf16.mxu0 0
        %1490 = vmatpush1.bf16.xpose.msra.mxu0 0
        %1491 = vmatprep.subr.bf16.mxu0 0
        %1492 = vmatpush1.bf16.xpose.msra.mxu0 0
        %1493 = vmatprep.subr.bf16.mxu0 0
        %1494 = vmatpush1.bf16.xpose.msra.mxu0 0
        %1495 = vmatprep.subr.bf16.mxu0 0
        %1496 = vmatpush1.bf16.xpose.msra.mxu0 0
        %1497 = vmatprep.subr.bf16.mxu0 0
        %1498 = vmatpush1.bf16.xpose.msra.mxu0 0
        %1499 = vmatprep.subr.bf16.mxu0 0
        %1500 = vmatpush1.bf16.xpose.msra.mxu0 0
        %1501 = vmatprep.subr.bf16.mxu0 0
        %1502 = vmatpush1.bf16.xpose.msra.mxu0 0
        %1503 = vmatprep.subr.bf16.mxu0 0
        %1504 = vmatpush1.bf16.xpose.msra.mxu0 0
        %1505 = vmatprep.subr.bf16.mxu0 0
        %1506 = vmatpush1.bf16.xpose.msra.mxu0 0
        %1507 = vmatprep.subr.bf16.mxu0 0
        %1508 = vmatpush1.bf16.xpose.msra.mxu0 0
        %1509 = vmatprep.subr.bf16.mxu0 0
        %1510 = vmatpush1.bf16.xpose.msra.mxu0 0
        %1511 = vmatprep.subr.bf16.mxu0 0
        %1512 = vmatpush1.bf16.xpose.msra.mxu0 0
        %1513 = vmatprep.mubr.bf16.mxu0 0
        %1514 = vmatmul.mubr.bf16.gmra.mrb[0].mxu0 %v1476
        %v1515 = vpop.f32.mrb[0].mxu0
        %v1516 = vadd.f32 %v395, %v1515
        %v1517 = vpop.f32.mrb[0].mxu0
        %v1518 = vpop.f32.mrb[0].mxu0
        %v1519 = vpop.f32.mrb[0].mxu0
        %1520 = vdwg.mxu0
        %v1521 = vsel %vm462, %v1516, -inf
        %1522 = vmax.xlane.f32.xlu0 %v1521
        %v1523 = vpop.xlane.xlu0 %1522
        %v1524 = vsub.f32 %v1516, %v1523
        %v1525 = vmul.f32 %v1524, 1.442695
        %v1526 = vpow.pop %v1525
        %v1527 = vsel %vm462, %v1526, 0.0
        %1528 = vadd.xlane.f32.xlu0 %v1527
        %v1529 = vpop.xlane.xlu0 %1528
        %v1530 = vrcp.pop %v1529
        %v1531 = vmul.f32 %v1526, %v1530
        %v1532 = vpack.c.bf16 %v1531, %v1531
        %1533 = vrot.lane.b32.xlu0 %v1251, 48
        %v1534 = vpop.permute.xlu0 %1533
        %v1536 = vsel %vm462, %v1532, 0
        %v1539 = vsel %vm526, %v1534, 0
        %1541 = vmatprep.subr.bf16.mxu0 0
        %1542 = vmatpush1.bf16.msra.mxu0 %v1539
        %1543 = vmatprep.subr.bf16.mxu0 0
        %1544 = vmatpush1.bf16.msra.mxu0 0
        %1545 = vmatprep.subr.bf16.mxu0 0
        %1546 = vmatpush1.bf16.msra.mxu0 0
        %1547 = vmatprep.subr.bf16.mxu0 0
        %1548 = vmatpush1.bf16.msra.mxu0 0
        %1549 = vmatprep.subr.bf16.mxu0 0
        %1550 = vmatpush1.bf16.msra.mxu0 0
        %1551 = vmatprep.subr.bf16.mxu0 0
        %1552 = vmatpush1.bf16.msra.mxu0 0
        %1553 = vmatprep.subr.bf16.mxu0 0
        %1554 = vmatpush1.bf16.msra.mxu0 0
        %1555 = vmatprep.subr.bf16.mxu0 0
        %1556 = vmatpush1.bf16.msra.mxu0 0
        %1557 = vmatprep.subr.bf16.mxu0 0
        %1558 = vmatpush1.bf16.msra.mxu0 0
        %1559 = vmatprep.subr.bf16.mxu0 0
        %1560 = vmatpush1.bf16.msra.mxu0 0
        %1561 = vmatprep.subr.bf16.mxu0 0
        %1562 = vmatpush1.bf16.msra.mxu0 0
        %1563 = vmatprep.subr.bf16.mxu0 0
        %1564 = vmatpush1.bf16.msra.mxu0 0
        %1565 = vmatprep.subr.bf16.mxu0 0
        %1566 = vmatpush1.bf16.msra.mxu0 0
        %1567 = vmatprep.subr.bf16.mxu0 0
        %1568 = vmatpush1.bf16.msra.mxu0 0
        %1569 = vmatprep.subr.bf16.mxu0 0
        %1570 = vmatpush1.bf16.msra.mxu0 0
        %1571 = vmatprep.subr.bf16.mxu0 0
        %1572 = vmatpush1.bf16.msra.mxu0 0
        %1573 = vmatprep.mubr.bf16.mxu0 0
        %1574 = vmatmul.mubr.bf16.gmra.mrb[0].mxu0 %v1536
        %v1575 = vpop.f32.mrb[0].mxu0
        %v1576 = vadd.f32 0.0, %v1575
        %v1577 = vpop.f32.mrb[0].mxu0
        %v1578 = vpop.f32.mrb[0].mxu0
        %v1579 = vpop.f32.mrb[0].mxu0
        %1580 = vdwg.mxu0
        %1581 = vrot.lane.b32.xlu0 %v1251, 104
        %v1582 = vpop.permute.xlu0 %1581
        %1583 = vrot.lane.b32.xlu0 %v1251, 72
        %v1584 = vpop.permute.xlu0 %1583
        %v1586 = vsel %vm462, %v1582, 0
        %v1589 = vsel %vm462, %v1584, 0
        %1591 = vmatprep.subr.bf16.mxu0 0
        %1592 = vmatpush1.bf16.xpose.msra.mxu0 %v1589
        %1593 = vmatprep.subr.bf16.mxu0 0
        %1594 = vmatpush1.bf16.xpose.msra.mxu0 0
        %1595 = vmatprep.subr.bf16.mxu0 0
        %1596 = vmatpush1.bf16.xpose.msra.mxu0 0
        %1597 = vmatprep.subr.bf16.mxu0 0
        %1598 = vmatpush1.bf16.xpose.msra.mxu0 0
        %1599 = vmatprep.subr.bf16.mxu0 0
        %1600 = vmatpush1.bf16.xpose.msra.mxu0 0
        %1601 = vmatprep.subr.bf16.mxu0 0
        %1602 = vmatpush1.bf16.xpose.msra.mxu0 0
        %1603 = vmatprep.subr.bf16.mxu0 0
        %1604 = vmatpush1.bf16.xpose.msra.mxu0 0
        %1605 = vmatprep.subr.bf16.mxu0 0
        %1606 = vmatpush1.bf16.xpose.msra.mxu0 0
        %1607 = vmatprep.subr.bf16.mxu0 0
        %1608 = vmatpush1.bf16.xpose.msra.mxu0 0
        %1609 = vmatprep.subr.bf16.mxu0 0
        %1610 = vmatpush1.bf16.xpose.msra.mxu0 0
        %1611 = vmatprep.subr.bf16.mxu0 0
        %1612 = vmatpush1.bf16.xpose.msra.mxu0 0
        %1613 = vmatprep.subr.bf16.mxu0 0
        %1614 = vmatpush1.bf16.xpose.msra.mxu0 0
        %1615 = vmatprep.subr.bf16.mxu0 0
        %1616 = vmatpush1.bf16.xpose.msra.mxu0 0
        %1617 = vmatprep.subr.bf16.mxu0 0
        %1618 = vmatpush1.bf16.xpose.msra.mxu0 0
        %1619 = vmatprep.subr.bf16.mxu0 0
        %1620 = vmatpush1.bf16.xpose.msra.mxu0 0
        %1621 = vmatprep.subr.bf16.mxu0 0
        %1622 = vmatpush1.bf16.xpose.msra.mxu0 0
        %1623 = vmatprep.mubr.bf16.mxu0 0
        %1624 = vmatmul.mubr.bf16.gmra.mrb[0].mxu0 %v1586
        %v1625 = vpop.f32.mrb[0].mxu0
        %v1626 = vadd.f32 %v395, %v1625
        %v1627 = vpop.f32.mrb[0].mxu0
        %v1628 = vpop.f32.mrb[0].mxu0
        %v1629 = vpop.f32.mrb[0].mxu0
        %1630 = vdwg.mxu0
        %v1631 = vsel %vm462, %v1626, -inf
        %1632 = vmax.xlane.f32.xlu0 %v1631
        %v1633 = vpop.xlane.xlu0 %1632
        %v1634 = vsub.f32 %v1626, %v1633
        %v1635 = vmul.f32 %v1634, 1.442695
        %v1636 = vpow.pop %v1635
        %v1637 = vsel %vm462, %v1636, 0.0
        %1638 = vadd.xlane.f32.xlu0 %v1637
        %v1639 = vpop.xlane.xlu0 %1638
        %v1640 = vrcp.pop %v1639
        %v1641 = vmul.f32 %v1636, %v1640
        %v1642 = vpack.c.bf16 %v1641, %v1641
        %1643 = vrot.lane.b32.xlu0 %v1251, 40
        %v1644 = vpop.permute.xlu0 %1643
        %v1646 = vsel %vm462, %v1642, 0
        %v1649 = vsel %vm526, %v1644, 0
        %1651 = vmatprep.subr.bf16.mxu0 0
        %1652 = vmatpush1.bf16.msra.mxu0 %v1649
        %1653 = vmatprep.subr.bf16.mxu0 0
        %1654 = vmatpush1.bf16.msra.mxu0 0
        %1655 = vmatprep.subr.bf16.mxu0 0
        %1656 = vmatpush1.bf16.msra.mxu0 0
        %1657 = vmatprep.subr.bf16.mxu0 0
        %1658 = vmatpush1.bf16.msra.mxu0 0
        %1659 = vmatprep.subr.bf16.mxu0 0
        %1660 = vmatpush1.bf16.msra.mxu0 0
        %1661 = vmatprep.subr.bf16.mxu0 0
        %1662 = vmatpush1.bf16.msra.mxu0 0
        %1663 = vmatprep.subr.bf16.mxu0 0
        %1664 = vmatpush1.bf16.msra.mxu0 0
        %1665 = vmatprep.subr.bf16.mxu0 0
        %1666 = vmatpush1.bf16.msra.mxu0 0
        %1667 = vmatprep.subr.bf16.mxu0 0
        %1668 = vmatpush1.bf16.msra.mxu0 0
        %1669 = vmatprep.subr.bf16.mxu0 0
        %1670 = vmatpush1.bf16.msra.mxu0 0
        %1671 = vmatprep.subr.bf16.mxu0 0
        %1672 = vmatpush1.bf16.msra.mxu0 0
        %1673 = vmatprep.subr.bf16.mxu0 0
        %1674 = vmatpush1.bf16.msra.mxu0 0
        %1675 = vmatprep.subr.bf16.mxu0 0
        %1676 = vmatpush1.bf16.msra.mxu0 0
        %1677 = vmatprep.subr.bf16.mxu0 0
        %1678 = vmatpush1.bf16.msra.mxu0 0
        %1679 = vmatprep.subr.bf16.mxu0 0
        %1680 = vmatpush1.bf16.msra.mxu0 0
        %1681 = vmatprep.subr.bf16.mxu0 0
        %1682 = vmatpush1.bf16.msra.mxu0 0
        %1683 = vmatprep.mubr.bf16.mxu0 0
        %1684 = vmatmul.mubr.bf16.gmra.mrb[0].mxu0 %v1646
        %v1685 = vpop.f32.mrb[0].mxu0
        %v1686 = vadd.f32 0.0, %v1685
        %v1687 = vpop.f32.mrb[0].mxu0
        %v1688 = vpop.f32.mrb[0].mxu0
        %v1689 = vpop.f32.mrb[0].mxu0
        %1690 = vdwg.mxu0
        %1692 = vrot.lane.b32.xlu0 %v1466, 8
        %v1693 = vpop.permute.xlu0 %1692
        %1696 = vrot.lane.b32.xlu0 %v1576, 16
        %v1697 = vpop.permute.xlu0 %1696
        %1700 = vrot.lane.b32.xlu0 %v1686, 24
        %v1701 = vpop.permute.xlu0 %1700
        %v1703 = vsel %vm462, %v1356, %v1693
        %v1704 = vsel %vm913, %v1703, %v1697
        %v1705 = vsel %vm915, %v1704, %v1701
        %v1706 = vpack.c.bf16 %v1705, %v1705
        %s1707 = scalar_lea.vmem %s3, 16
        %v1708 = vld [vmem:[%s1707] sm:$0xf]
        %v1709 = vld [vmem:[%s1707 + $0x4] sm:$0xf]
        %v1710 = vld [vmem:[%s1707 + $0x8] sm:$0xf]
        %v1711 = vld [vmem:[%s1707 + $0xc] sm:$0xf]
        %v1716 = vunpack.c.l.b16 %v1708
        %v1717 = vunpack.c.l.b16 %v1709
        %v1718 = vunpack.c.l.b16 %v1710
        %v1719 = vunpack.c.l.b16 %v1711
        %v1720 = vpack.c.b16 %v1717, %v1716
        %v1721 = vpack.c.b16 %v1719, %v1718
        %v1725 = vsel %vm414, %v1706, 0
        %1727 = vmatprep.subr.bf16.mxu0 0
        %1728 = vmatpush1.bf16.msra.mxu0 %v1720
        %1729 = vmatprep.subr.bf16.mxu0 0
        %1730 = vmatpush1.bf16.msra.mxu0 %v1721
        %1731 = vmatprep.subr.bf16.mxu0 0
        %1732 = vmatpush1.bf16.msra.mxu0 0
        %1733 = vmatprep.subr.bf16.mxu0 0
        %1734 = vmatpush1.bf16.msra.mxu0 0
        %1735 = vmatprep.subr.bf16.mxu0 0
        %1736 = vmatpush1.bf16.msra.mxu0 0
        %1737 = vmatprep.subr.bf16.mxu0 0
        %1738 = vmatpush1.bf16.msra.mxu0 0
        %1739 = vmatprep.subr.bf16.mxu0 0
        %1740 = vmatpush1.bf16.msra.mxu0 0
        %1741 = vmatprep.subr.bf16.mxu0 0
        %1742 = vmatpush1.bf16.msra.mxu0 0
        %1743 = vmatprep.subr.bf16.mxu0 0
        %1744 = vmatpush1.bf16.msra.mxu0 0
        %1745 = vmatprep.subr.bf16.mxu0 0
        %1746 = vmatpush1.bf16.msra.mxu0 0
        %1747 = vmatprep.subr.bf16.mxu0 0
        %1748 = vmatpush1.bf16.msra.mxu0 0
        %1749 = vmatprep.subr.bf16.mxu0 0
        %1750 = vmatpush1.bf16.msra.mxu0 0
        %1751 = vmatprep.subr.bf16.mxu0 0
        %1752 = vmatpush1.bf16.msra.mxu0 0
        %1753 = vmatprep.subr.bf16.mxu0 0
        %1754 = vmatpush1.bf16.msra.mxu0 0
        %1755 = vmatprep.subr.bf16.mxu0 0
        %1756 = vmatpush1.bf16.msra.mxu0 0
        %1757 = vmatprep.subr.bf16.mxu0 0
        %1758 = vmatpush1.bf16.msra.mxu0 0
        %1759 = vmatprep.mubr.bf16.mxu0 0
        %1760 = vmatmul.mubr.bf16.gmra.mrb[0].mxu0 %v1725
        %v1761 = vpop.f32.mrb[0].mxu0
        %v1762 = vadd.f32 0.0, %v1761
        %v1763 = vpop.f32.mrb[0].mxu0
        %v1764 = vpop.f32.mrb[0].mxu0
        %v1765 = vpop.f32.mrb[0].mxu0
        %1766 = vdwg.mxu0
        %v1767 = vadd.f32 %v1189, %v1762
        %v1768 = vsel %vm414, %v1767, 0.0
        %1769 = vadd.xlane.f32.xlu0 %v1768
        %v1770 = vpop.xlane.xlu0 %1769
        %v1771 = vmul.f32 %v1770, %v981
        %v1772 = vsub.f32 %v1767, %v1771
        %v1773 = vmul.f32 %v1772, %v1772
        %v1774 = vsel %vm414, %v1773, 0.0
        %1775 = vadd.xlane.f32.xlu0 %v1774
        %v1776 = vpop.xlane.xlu0 %1775
        %v1777 = vmul.f32 %v1776, %v981
        %v1778 = vadd.f32 %v1777, 1e-05
        %v1779 = vrsqrt.pop %v1778
        %v1780 = vmul.f32 %v1772, %v1779
        %s1781 = scalar_lea.vmem %s4, 1
        %v1782 = vld [vmem:[%s1781] sm:$0x1]
        %v1784 = vlaneseq
        %v1785 = vshrl.u32 %v1784, 7
        %v1786 = vsub.s32 0, %v1785
        %v1787 = vrot.slane %v1782, %v1786
        %v1789 = vmul.f32 %v1780, %v1787
        %s1790 = scalar_lea.vmem %s5, 1
        %v1791 = vld [vmem:[%s1790] sm:$0x1]
        %v1793 = vlaneseq
        %v1794 = vshrl.u32 %v1793, 7
        %v1795 = vsub.s32 0, %v1794
        %v1796 = vrot.slane %v1791, %v1795
        %v1798 = vadd.f32 %v1789, %v1796
        %v1799 = vpack.c.bf16 %v1798, %v1798
        %s1800 = scalar_lea.vmem %s6, 16
        %v1801 = vld [vmem:[%s1800] sm:$0xf]
        %v1802 = vld [vmem:[%s1800 + $0x4] sm:$0xf]
        %v1803 = vld [vmem:[%s1800 + $0x8] sm:$0xf]
        %v1804 = vld [vmem:[%s1800 + $0xc] sm:$0xf]
        %s1805 = scalar_lea.vmem %s7, 1
        %v1806 = vld [vmem:[%s1805] sm:$0x1]
        %v1808 = vlaneseq
        %v1809 = vshrl.u32 %v1808, 7
        %v1810 = vsub.s32 0, %v1809
        %v1811 = vrot.slane %v1806, %v1810
        %v1817 = vunpack.c.l.b16 %v1801
        %v1818 = vunpack.c.l.b16 %v1802
        %v1819 = vunpack.c.l.b16 %v1803
        %v1820 = vunpack.c.l.b16 %v1804
        %v1821 = vpack.c.b16 %v1818, %v1817
        %v1822 = vpack.c.b16 %v1820, %v1819
        %v1826 = vsel %vm414, %v1799, 0
        %1828 = vmatprep.subr.bf16.mxu0 0
        %1829 = vmatpush1.bf16.msra.mxu0 %v1821
        %1830 = vmatprep.subr.bf16.mxu0 0
        %1831 = vmatpush1.bf16.msra.mxu0 %v1822
        %1832 = vmatprep.subr.bf16.mxu0 0
        %1833 = vmatpush1.bf16.msra.mxu0 0
        %1834 = vmatprep.subr.bf16.mxu0 0
        %1835 = vmatpush1.bf16.msra.mxu0 0
        %1836 = vmatprep.subr.bf16.mxu0 0
        %1837 = vmatpush1.bf16.msra.mxu0 0
        %1838 = vmatprep.subr.bf16.mxu0 0
        %1839 = vmatpush1.bf16.msra.mxu0 0
        %1840 = vmatprep.subr.bf16.mxu0 0
        %1841 = vmatpush1.bf16.msra.mxu0 0
        %1842 = vmatprep.subr.bf16.mxu0 0
        %1843 = vmatpush1.bf16.msra.mxu0 0
        %1844 = vmatprep.subr.bf16.mxu0 0
        %1845 = vmatpush1.bf16.msra.mxu0 0
        %1846 = vmatprep.subr.bf16.mxu0 0
        %1847 = vmatpush1.bf16.msra.mxu0 0
        %1848 = vmatprep.subr.bf16.mxu0 0
        %1849 = vmatpush1.bf16.msra.mxu0 0
        %1850 = vmatprep.subr.bf16.mxu0 0
        %1851 = vmatpush1.bf16.msra.mxu0 0
        %1852 = vmatprep.subr.bf16.mxu0 0
        %1853 = vmatpush1.bf16.msra.mxu0 0
        %1854 = vmatprep.subr.bf16.mxu0 0
        %1855 = vmatpush1.bf16.msra.mxu0 0
        %1856 = vmatprep.subr.bf16.mxu0 0
        %1857 = vmatpush1.bf16.msra.mxu0 0
        %1858 = vmatprep.subr.bf16.mxu0 0
        %1859 = vmatpush1.bf16.msra.mxu0 0
        %1860 = vmatprep.mubr.bf16.mxu0 0
        %1861 = vmatmul.mubr.bf16.gmra.mrb[0].mxu0 %v1826
        %v1862 = vpop.f32.mrb[0].mxu0
        %v1863 = vadd.f32 %v1811, %v1862
        %v1864 = vpop.f32.mrb[0].mxu0
        %v1865 = vpop.f32.mrb[0].mxu0
        %v1866 = vpop.f32.mrb[0].mxu0
        %1867 = vdwg.mxu0
        %v1868 = vmax.f32 %v1863, 0.0
        %v1869 = vpack.c.bf16 %v1868, %v1868
        %s1870 = scalar_lea.vmem %s8, 32
        %v1871 = vld [vmem:[%s1870] sm:$0xf]
        %v1872 = vld [vmem:[%s1870 + $0x4] sm:$0xf]
        %v1873 = vld [vmem:[%s1870 + $0x8] sm:$0xf]
        %v1874 = vld [vmem:[%s1870 + $0xc] sm:$0xf]
        %v1875 = vld [vmem:[%s1870 + $0x10] sm:$0xf]
        %v1876 = vld [vmem:[%s1870 + $0x14] sm:$0xf]
        %v1877 = vld [vmem:[%s1870 + $0x18] sm:$0xf]
        %v1878 = vld [vmem:[%s1870 + $0x1c] sm:$0xf]
        %s1879 = scalar_lea.vmem %s9, 1
        %v1880 = vld [vmem:[%s1879] sm:$0x1]
        %v1882 = vlaneseq
        %v1883 = vshrl.u32 %v1882, 7
        %v1884 = vsub.s32 0, %v1883
        %v1885 = vrot.slane %v1880, %v1884
        %v1895 = vunpack.c.l.b16 %v1871
        %v1896 = vunpack.c.l.b16 %v1872
        %v1897 = vunpack.c.l.b16 %v1873
        %v1898 = vunpack.c.l.b16 %v1874
        %v1899 = vunpack.c.l.b16 %v1875
        %v1900 = vunpack.c.l.b16 %v1876
        %v1901 = vunpack.c.l.b16 %v1877
        %v1902 = vunpack.c.l.b16 %v1878
        %v1903 = vpack.c.b16 %v1896, %v1895
        %v1904 = vpack.c.b16 %v1898, %v1897
        %v1905 = vpack.c.b16 %v1900, %v1899
        %v1906 = vpack.c.b16 %v1902, %v1901
        %v1912 = vsel %vm1116, %v1869, 0
        %1914 = vmatprep.subr.bf16.mxu0 0
        %1915 = vmatpush1.bf16.msra.mxu0 %v1903
        %1916 = vmatprep.subr.bf16.mxu0 0
        %1917 = vmatpush1.bf16.msra.mxu0 %v1904
        %1918 = vmatprep.subr.bf16.mxu0 0
        %1919 = vmatpush1.bf16.msra.mxu0 %v1905
        %1920 = vmatprep.subr.bf16.mxu0 0
        %1921 = vmatpush1.bf16.msra.mxu0 %v1906
        %1922 = vmatprep.subr.bf16.mxu0 0
        %1923 = vmatpush1.bf16.msra.mxu0 0
        %1924 = vmatprep.subr.bf16.mxu0 0
        %1925 = vmatpush1.bf16.msra.mxu0 0
        %1926 = vmatprep.subr.bf16.mxu0 0
        %1927 = vmatpush1.bf16.msra.mxu0 0
        %1928 = vmatprep.subr.bf16.mxu0 0
        %1929 = vmatpush1.bf16.msra.mxu0 0
        %1930 = vmatprep.subr.bf16.mxu0 0
        %1931 = vmatpush1.bf16.msra.mxu0 0
        %1932 = vmatprep.subr.bf16.mxu0 0
        %1933 = vmatpush1.bf16.msra.mxu0 0
        %1934 = vmatprep.subr.bf16.mxu0 0
        %1935 = vmatpush1.bf16.msra.mxu0 0
        %1936 = vmatprep.subr.bf16.mxu0 0
        %1937 = vmatpush1.bf16.msra.mxu0 0
        %1938 = vmatprep.subr.bf16.mxu0 0
        %1939 = vmatpush1.bf16.msra.mxu0 0
        %1940 = vmatprep.subr.bf16.mxu0 0
        %1941 = vmatpush1.bf16.msra.mxu0 0
        %1942 = vmatprep.subr.bf16.mxu0 0
        %1943 = vmatpush1.bf16.msra.mxu0 0
        %1944 = vmatprep.subr.bf16.mxu0 0
        %1945 = vmatpush1.bf16.msra.mxu0 0
        %1946 = vmatprep.mubr.bf16.mxu0 0
        %1947 = vmatmul.mubr.bf16.gmra.mrb[0].mxu0 %v1912
        %v1948 = vpop.f32.mrb[0].mxu0
        %v1949 = vadd.f32 %v1885, %v1948
        %v1950 = vpop.f32.mrb[0].mxu0
        %v1951 = vpop.f32.mrb[0].mxu0
        %v1952 = vpop.f32.mrb[0].mxu0
        %1953 = vdwg.mxu0
        %v1954 = vadd.f32 %v1798, %v1949
        %v1955 = vsel %vm414, %v1954, 0.0
        %1956 = vadd.xlane.f32.xlu0 %v1955
        %v1957 = vpop.xlane.xlu0 %1956
        %v1958 = vmul.f32 %v1957, %v981
        %v1959 = vsub.f32 %v1954, %v1958
        %v1960 = vmul.f32 %v1959, %v1959
        %v1961 = vsel %vm414, %v1960, 0.0
        %1962 = vadd.xlane.f32.xlu0 %v1961
        %v1963 = vpop.xlane.xlu0 %1962
        %v1964 = vmul.f32 %v1963, %v981
        %v1965 = vadd.f32 %v1964, 1e-05
        %v1966 = vrsqrt.pop %v1965
        %v1967 = vmul.f32 %v1959, %v1966
        %s1968 = scalar_lea.vmem %s10, 1
        %v1969 = vld [vmem:[%s1968] sm:$0x1]
        %v1971 = vlaneseq
        %v1972 = vshrl.u32 %v1971, 7
        %v1973 = vsub.s32 0, %v1972
        %v1974 = vrot.slane %v1969, %v1973
        %v1976 = vmul.f32 %v1967, %v1974
        %s1977 = scalar_lea.vmem %s11, 1
        %v1978 = vld [vmem:[%s1977] sm:$0x1]
        %v1980 = vlaneseq
        %v1981 = vshrl.u32 %v1980, 7
        %v1982 = vsub.s32 0, %v1981
        %v1983 = vrot.slane %v1978, %v1982
        %v1985 = vadd.f32 %v1976, %v1983
        %1986 = vst.msk [vmem:[%s384] sm:$0xff] %vm414, %v1985
        %s1987 = sand.u32 %s276, 1
        %s1988 = scalar_lea.sflag [#allocation5], %s1987
        %s1989 = sand.u32 %s276, 1
        %s1990 = smul.addr %s1989, 8
        %s1991 = scalar_lea.vmem [#allocation4], %s1990
        // Predicated region
        $region65: #{transformer_encoder_forward.1} parent=63 // pred_check
          %p1992 = pneg %p286
        $region66: #{transformer_encoder_forward.1} parent=63 // pred_check_branch
          %1994 = sbr.rel (%p1992) target = $region68
        $region67: #{transformer_encoder_forward.1} parent=63 // pred_region
          %s1996 = ssub.s32 128, 128
          %1997 = vsyncadd %s1988, %s1996
          %s1998 = smul.addr %s32, 128
          %s1999 = scalar_lea.hbm %s12, %s1998
          %s2001 = sshll.u32 %s1991, 4
          %s2002 = int_to_ptr.vmem [resolvable:$true] %s2001
          %2004 = dma.vmem_to_hbm [thread:$0]  %s2002, 128, %s1999, %s1988
        $region68: #{transformer_encoder_forward.1} parent=63 // pred_fallthru
          _
      $region64: #{transformer_encoder_forward.1} parent=5 // pred_fallthru
        _
      %p2005 = scmp.le.s32.totalorder 2, %s27
      // Predicated region
      $region69: #{transformer_encoder_forward.1} parent=5 // pred_check
        %p2006 = pneg %p2005
      $region70: #{transformer_encoder_forward.1} parent=5 // pred_check_branch
        %2008 = sbr.rel (%p2006) target = $region72
      $region71: #{transformer_encoder_forward.1} parent=5 // pred_region
        %s2009 = ssub.s32 %s27, 2
        // Predicated region
        $region73: #{transformer_encoder_forward.1} parent=71 // pred_check
          %p2010 = pneg %p292
        $region74: #{transformer_encoder_forward.1} parent=71 // pred_check_branch
          %2012 = sbr.rel (%p2010) target = $region76
        $region75: #{transformer_encoder_forward.1} parent=71 // pred_region
          %s2013 = sand.u32 %s277, 1
          %s2014 = scalar_lea.sflag [#allocation5], %s2013
          %s2015 = sand.u32 %s277, 1
          %s2016 = smul.addr %s2015, 8
          %s2017 = scalar_lea.vmem [#allocation4], %s2016
          %2018 = dma.done %s2014, 128
        $region76: #{transformer_encoder_forward.1} parent=71 // pred_fallthru
          _
      $region72: #{transformer_encoder_forward.1} parent=5 // pred_fallthru
        _
    $region6: #{transformer_encoder_forward.1} parent=1 // loop_footer
      %s31 = sadd.s32 1, %s27
    $region7: #{transformer_encoder_forward.1} parent=1 // loop_footer_branch
      %26 = sbr.rel target = $region3
    $region8: #{transformer_encoder_forward.1} parent=1 // loop_exit
      _
    %2019 = vsyncpa [#allocation5], 1
    %s2020 = scalar_lea.sflag [#allocation5], 1
    %2021 = vsyncpa %s2020, 1

</llo_original>
